<compile_context>
chip_gen: v5e
topology: v5e:2x2
jax: 0.10.0
libtpu: 0.0.40
codegen_flags: <defaults>
</compile_context>

<pallas_src>
import functools

import jax
import jax.numpy as jnp
from jax.experimental import pallas as pl
from jax.experimental.pallas import tpu as pltpu


def _vq_kernel(x_ref, emb_ref, embt_ref, e2_ref,
               q_ref, ids_ref, sse_ref, csum_ref, *,
               block_n, n_total, num_embeddings, needs_mask):
    x = x_ref[...]                 # (TN, D) float32
    emb = emb_ref[...]             # (K, D)  float32   (grid-invariant)
    embt = embt_ref[...]           # (D, K)  bf16/f32  (grid-invariant, -2 * e^T)
    e2 = e2_ref[...]               # (1, K)  float32   (grid-invariant, ||e||^2)

    # distances' = ||e||^2 - 2 x e^T  (per-row ||x||^2 dropped: argmin-invariant;
    # the -2 is already folded into embt). bf16 MXU feeds, f32 accumulation.
    xd = x.astype(embt.dtype)
    d = e2 + jnp.dot(xd, embt, preferred_element_type=jnp.float32)     # (TN, K)

    # argmin over codebook axis (first occurrence on ties, like torch.argmin)
    iota_k = jax.lax.broadcasted_iota(jnp.int32, d.shape, 1)           # (TN, K)
    min_d = jnp.min(d, axis=1, keepdims=True)
    ids = jnp.min(jnp.where(d == min_d, iota_k, num_embeddings),
                  axis=1, keepdims=True)                               # (TN, 1)

    if needs_mask:
        # Only generated when N % block_n != 0: poison padded rows' ids with K
        # so their one-hot row is all-zero -> q, SSE and csum are automatically
        # correct. Cheap (block_n, 1) ops instead of a (block_n, K) mask mul.
        i = pl.program_id(0)
        row = i * block_n + jax.lax.broadcasted_iota(jnp.int32, (block_n, 1), 0)
        ids = jnp.where(row < n_total, ids, num_embeddings)

    enc = (iota_k == ids).astype(jnp.float32)                          # (TN, K)
    # quantized = one_hot @ embedding (f32: exact codebook rows)
    q = jnp.dot(enc, emb, preferred_element_type=jnp.float32)          # (TN, D)

    q_ref[...] = q
    ids_ref[...] = ids

    # per-tile partial reductions (final loss/perplexity reduced in wrapper)
    diff = q - x                              # padded rows: q == 0, x == 0 -> 0
    sse_ref[...] = jnp.sum(diff * diff).reshape(1, 1, 1)
    csum_ref[...] = jnp.sum(enc, axis=0).reshape(1, 1, num_embeddings)


def _round_up(v, m):
    return ((v + m - 1) // m) * m


def _vmem_estimate(block_n, D, K, dist_bytes):
    """Conservative per-call VMEM bytes for a given tile size."""
    f32 = 4
    # double-buffered I/O tiles: x in, q out, ids out, tiny partials
    io = 2 * (2 * block_n * D * f32 + block_n * 4 + (1 + K) * f32)
    # grid-invariant codebook inputs (count double-buffered to be safe)
    codebook = 2 * (K * D * f32 + D * K * dist_bytes + K * f32)
    # ~6 live (block_n, K) f32 temporaries (d, iota, compare, where, enc, ...)
    interm = (6 * block_n * K * f32 + 4 * block_n * D * f32
              + block_n * D * dist_bytes)
    return io + codebook + interm + (2 << 20)


def _select_tiling(N, D, K, dist_bytes, requested_block_n=None):
    """Generation-aware block_n / VMEM-limit selection."""
    try:
        vmem_phys = pltpu.get_tpu_info().vmem_capacity_bytes
    except Exception:
        vmem_phys = 64 << 20                      # assume tightest (v7x) budget
    if vmem_phys > (64 << 20):
        # v5e / v6e: 128 MiB VMEM, 1 TensorCore -> big tiles, ~100 MiB cap
        gen_cap, default_bn, min_tiles = 100 << 20, 2048, 1
    else:
        # v7x: 64 MiB VMEM, 2 TensorCores -> <=48 MiB cap, at least 2 tiles
        gen_cap, default_bn, min_tiles = 48 << 20, 1024, 2

    block_n = requested_block_n if requested_block_n is not None else default_bn
    if min_tiles > 1 and N > 8:
        block_n = min(block_n, _round_up(pl.cdiv(N, min_tiles), 8))
    block_n = max(8, min(_round_up(block_n, 8), _round_up(N, 8)))
    while block_n > 8 and _vmem_estimate(block_n, D, K, dist_bytes) > gen_cap:
        block_n = max(8, _round_up(block_n // 2, 8))

    vmem_limit = int(min(gen_cap,
                         max(32 << 20,
                             2 * _vmem_estimate(block_n, D, K, dist_bytes))))
    return block_n, vmem_limit


def vector_quantizer_ema_forward(x_nchw, embedding, commitment_cost,
                                 *, distance_dtype=jnp.bfloat16, block_n=None):
    """Eval-mode forward of VectorQuantizerEMA.

    Args:
      x_nchw:    (B, C, H, W) float32 input (C == embedding_dim).
      embedding: (num_embeddings, embedding_dim) float32 codebook.
      commitment_cost: python float.
      distance_dtype: dtype of the MXU feeds for the distance matmul. bf16 is
        MXU-native and ~2-4x faster, but near-ties may select a different
        (equally close) code than the exact f32 path.
    Returns:
      (loss, quantized_nchw, perplexity, encodings)
    """
    B, C, H, W = x_nchw.shape
    K, D = embedding.shape
    assert C == D

    # NCHW -> NHWC -> flat (N, D)
    flat = jnp.transpose(x_nchw, (0, 2, 3, 1)).reshape(-1, D).astype(jnp.float32)
    N = flat.shape[0]

    dist_bytes = jnp.dtype(distance_dtype).itemsize
    sel_block_n, vmem_limit = _select_tiling(N, D, K, dist_bytes, block_n)
    num_tiles = pl.cdiv(N, sel_block_n)
    n_pad = num_tiles * sel_block_n
    needs_mask = (n_pad != N)
    if needs_mask:
        flat = jnp.pad(flat, ((0, n_pad - N), (0, 0)))

    # Codebook-derived quantities hoisted out of the per-tile loop. The -2 is
    # folded into the transposed codebook (once, on the tiny (D, K) array).
    emb32 = embedding.astype(jnp.float32)                    # (K, D)
    embt = (-2.0 * emb32.T).astype(distance_dtype)           # (D, K)
    e2 = jnp.sum(emb32 * emb32, axis=1)[None, :]             # (1, K)

    kernel = functools.partial(
        _vq_kernel,
        block_n=sel_block_n,
        n_total=N,
        num_embeddings=K,
        needs_mask=needs_mask,
    )

    q_flat, ids, sse_part, csum_part = pl.pallas_call(
        kernel,
        out_shape=(
            jax.ShapeDtypeStruct((n_pad, D), jnp.float32),        # quantized (flat)
            jax.ShapeDtypeStruct((n_pad, 1), jnp.int32),          # code ids
            jax.ShapeDtypeStruct((num_tiles, 1, 1), jnp.float32),  # partial SSE
            jax.ShapeDtypeStruct((num_tiles, 1, K), jnp.float32),  # partial col-sums
        ),
        grid_spec=pltpu.PrefetchScalarGridSpec(
            num_scalar_prefetch=0,
            grid=(num_tiles,),
            in_specs=[
                pl.BlockSpec((sel_block_n, D), lambda i: (i, 0)),  # flat_x tile
                pl.BlockSpec((K, D), lambda i: (0, 0)),            # codebook
                pl.BlockSpec((D, K), lambda i: (0, 0)),            # -2 * codebook^T
                pl.BlockSpec((1, K), lambda i: (0, 0)),            # ||e||^2
            ],
            out_specs=[
                pl.BlockSpec((sel_block_n, D), lambda i: (i, 0)),
                pl.BlockSpec((sel_block_n, 1), lambda i: (i, 0)),
                pl.BlockSpec((1, 1, 1), lambda i: (i, 0, 0)),
                pl.BlockSpec((1, 1, K), lambda i: (i, 0, 0)),
            ],
        ),
        compiler_params=pltpu.CompilerParams(
            dimension_semantics=("parallel",),
            vmem_limit_bytes=vmem_limit),
    )(flat, emb32, embt, e2)

    # Tiny O(num_tiles * K) final reductions in plain XLA.
    sse = jnp.sum(sse_part)
    loss = jnp.float32(commitment_cost) * sse / jnp.float32(N * D)
    avg_probs = jnp.sum(csum_part, axis=(0, 1)) / jnp.float32(N)
    perplexity = jnp.exp(-jnp.sum(avg_probs * jnp.log(avg_probs + 1e-10)))

    # One-hot encodings rebuilt only for the module's return value (the kernel
    # no longer writes the dense N*K f32 matrix to HBM).
    ids = ids[:N, 0]
    encodings = jax.nn.one_hot(ids, K, dtype=jnp.float32)

    # straight-through estimator: value of (inputs + (q - inputs).detach()) == q
    q_flat = q_flat[:N]
    quantized_nchw = jnp.transpose(q_flat.reshape(B, H, W, D), (0, 3, 1, 2))

    return loss, quantized_nchw, perplexity, encodings


def _reference(x_nchw, embedding, commitment_cost):
    """Pure-JAX reference matching the PyTorch eval forward."""
    B, C, H, W = x_nchw.shape
    flat = jnp.transpose(x_nchw, (0, 2, 3, 1)).reshape(-1, C)
    d = (jnp.sum(flat ** 2, axis=1, keepdims=True)
         + jnp.sum(embedding ** 2, axis=1)
         - 2.0 * flat @ embedding.T)
    ids = jnp.argmin(d, axis=1)
    enc = jax.nn.one_hot(ids, embedding.shape[0], dtype=jnp.float32)
    q = enc @ embedding
    loss = commitment_cost * jnp.mean((q - flat) ** 2)
    avg = jnp.mean(enc, axis=0)
    ppl = jnp.exp(-jnp.sum(avg * jnp.log(avg + 1e-10)))
    q_nchw = jnp.transpose(q.reshape(B, H, W, C), (0, 3, 1, 2))
    return loss, q_nchw, ppl, enc


if __name__ == "__main__":
    # Module hyperparameters (small, consistent with the torch __init__).
    num_embeddings = 8
    embedding_dim = 4
    commitment_cost = 0.25

    key = jax.random.PRNGKey(0)
    k_x, k_e = jax.random.split(key)

    # NCHW input: C must equal embedding_dim.
    x = jax.random.normal(k_x, (2, embedding_dim, 16, 16), dtype=jnp.float32)
    # Deterministic "normal_()" codebook init.
    embedding = jax.random.normal(
        k_e, (num_embeddings, embedding_dim), dtype=jnp.float32)

    r_loss, r_q, r_ppl, r_enc = _reference(x, embedding, commitment_cost)

    # Exact-precision run (f32 distance feeds): must match the reference.
    loss, quantized, perplexity, encodings = vector_quantizer_ema_forward(
        x, embedding, commitment_cost, distance_dtype=jnp.float32)
    jax.block_until_ready((loss, quantized, perplexity, encodings))
    assert jnp.allclose(loss, r_loss, atol=1e-5, rtol=1e-5)
    assert jnp.allclose(quantized, r_q, atol=1e-5, rtol=1e-5)
    assert jnp.allclose(perplexity, r_ppl, atol=1e-5, rtol=1e-5)
    assert jnp.allclose(encodings, r_enc)

    # Default run (bf16 MXU feeds): near-ties may flip to an equally-close
    # code, so only aggregate statistics are checked (with loose tolerance).
    loss_bf, quantized_bf, ppl_bf, enc_bf = vector_quantizer_ema_forward(
        x, embedding, commitment_cost)
    jax.block_until_ready((loss_bf, quantized_bf, ppl_bf, enc_bf))
    assert quantized_bf.shape == x.shape
    assert enc_bf.shape == (2 * 16 * 16, num_embeddings)
    assert jnp.allclose(loss_bf, r_loss, rtol=5e-2, atol=1e-3)
    assert jnp.allclose(ppl_bf, r_ppl, rtol=5e-2, atol=1e-2)

    print("KERNEL_OK")
</pallas_src>

<mosaic_0001>
module attributes {stable_mosaic.version = 11 : i64} {
  func.func @_vq_kernel(%arg0: i32, %arg1: memref<256x4xf32, #tpu.memory_space<vmem>>, %arg2: memref<8x4xf32, #tpu.memory_space<vmem>>, %arg3: memref<4x8xf32, #tpu.memory_space<vmem>>, %arg4: memref<1x8xf32, #tpu.memory_space<vmem>>, %arg5: memref<256x4xf32, #tpu.memory_space<vmem>>, %arg6: memref<256x1xi32, #tpu.memory_space<vmem>>, %arg7: memref<1x1x1xf32, #tpu.memory_space<vmem>>, %arg8: memref<1x1x8xf32, #tpu.memory_space<vmem>>) attributes {dimension_semantics = [#tpu.dimension_semantics<parallel>], iteration_bounds = array<i64: 2>, scalar_prefetch = 0 : i64, scratch_operands = 0 : i64, tpu.core_type = #tpu.core_type<tc>, window_params = [{transform_indices = @transform_0, window_bounds = array<i64: 256, 4>}, {pipeline_mode = #tpu.pipeline_mode<synchronous>, transform_indices = @transform_1, window_bounds = array<i64: 8, 4>}, {pipeline_mode = #tpu.pipeline_mode<synchronous>, transform_indices = @transform_2, window_bounds = array<i64: 4, 8>}, {pipeline_mode = #tpu.pipeline_mode<synchronous>, transform_indices = @transform_3, window_bounds = array<i64: 1, 8>}, {transform_indices = @transform_4, window_bounds = array<i64: 256, 4>}, {transform_indices = @transform_5, window_bounds = array<i64: 256, 1>}, {transform_indices = @transform_6, window_bounds = array<i64: 1, 1, 1>}, {transform_indices = @transform_7, window_bounds = array<i64: 1, 1, 8>}]} {
    %c0 = arith.constant 0 : index
    %c0_0 = arith.constant 0 : index
    %0 = vector.load %arg1[%c0, %c0_0] : memref<256x4xf32, #tpu.memory_space<vmem>>, vector<256x4xf32>
    %c0_1 = arith.constant 0 : index
    %c0_2 = arith.constant 0 : index
    %1 = vector.load %arg2[%c0_1, %c0_2] : memref<8x4xf32, #tpu.memory_space<vmem>>, vector<8x4xf32>
    %c0_3 = arith.constant 0 : index
    %c0_4 = arith.constant 0 : index
    %2 = vector.load %arg3[%c0_3, %c0_4] : memref<4x8xf32, #tpu.memory_space<vmem>>, vector<4x8xf32>
    %c0_5 = arith.constant 0 : index
    %c0_6 = arith.constant 0 : index
    %3 = vector.load %arg4[%c0_5, %c0_6] : memref<1x8xf32, #tpu.memory_space<vmem>>, vector<1x8xf32>
    %cst = arith.constant dense<0.000000e+00> : vector<256x8xf32>
    %4 = tpu.matmul %0, %2, %cst {dimension_numbers = #tpu.dot_dimension_numbers<[1], [0], [0], [1], [0, 0, 1, 1], [], []>} : vector<256x4xf32>, vector<4x8xf32>, vector<256x8xf32> -> vector<256x8xf32>
    %5 = vector.broadcast %3 : vector<1x8xf32> to vector<256x8xf32>
    %6 = arith.addf %5, %4 : vector<256x8xf32>
    %7 = tpu.iota {dimensions = array<i32: 1>} : vector<256x8xi32>
    %cst_7 = arith.constant dense<0x7F800000> : vector<256xf32>
    %8 = vector.multi_reduction <minimumf>, %6, %cst_7 [1] : vector<256x8xf32> to vector<256xf32>
    %9 = vector.shape_cast %8 : vector<256xf32> to vector<256x1xf32>
    %10 = vector.broadcast %9 : vector<256x1xf32> to vector<256x8xf32>
    %11 = arith.cmpf oeq, %6, %10 : vector<256x8xf32>
    %c8_i32 = arith.constant 8 : i32
    %12 = vector.broadcast %c8_i32 : i32 to vector<256x8xi32>
    %13 = arith.select %11, %7, %12 : vector<256x8xi1>, vector<256x8xi32>
    %cst_8 = arith.constant dense<2147483647> : vector<256xi32>
    %14 = vector.multi_reduction <minsi>, %13, %cst_8 [1] : vector<256x8xi32> to vector<256xi32>
    %15 = vector.shape_cast %14 : vector<256xi32> to vector<256x1xi32>
    %16 = vector.broadcast %15 : vector<256x1xi32> to vector<256x8xi32>
    %17 = arith.cmpi eq, %7, %16 : vector<256x8xi32>
    %18 = arith.extui %17 : vector<256x8xi1> to vector<256x8xi32>
    %19 = arith.sitofp %18 : vector<256x8xi32> to vector<256x8xf32>
    %cst_9 = arith.constant dense<0.000000e+00> : vector<256x4xf32>
    %20 = tpu.matmul %19, %1, %cst_9 {dimension_numbers = #tpu.dot_dimension_numbers<[1], [0], [0], [1], [0, 0, 1, 1], [], []>} : vector<256x8xf32>, vector<8x4xf32>, vector<256x4xf32> -> vector<256x4xf32>
    %c0_10 = arith.constant 0 : index
    %c0_11 = arith.constant 0 : index
    %21 = vector.load %arg5[%c0_10, %c0_11] : memref<256x4xf32, #tpu.memory_space<vmem>>, vector<256x4xf32>
    tpu.vector_store %arg5[%c0_10, %c0_11], %20 {strides = array<i32>} : memref<256x4xf32, #tpu.memory_space<vmem>>, vector<256x4xf32>,
    %c0_12 = arith.constant 0 : index
    %c0_13 = arith.constant 0 : index
    %22 = vector.load %arg6[%c0_12, %c0_13] : memref<256x1xi32, #tpu.memory_space<vmem>>, vector<256x1xi32>
    tpu.vector_store %arg6[%c0_12, %c0_13], %15 {strides = array<i32>} : memref<256x1xi32, #tpu.memory_space<vmem>>, vector<256x1xi32>,
    %23 = arith.subf %20, %0 : vector<256x4xf32>
    %24 = arith.mulf %23, %23 : vector<256x4xf32>
    %25 = vector.shape_cast %24 : vector<256x4xf32> to vector<1x256x4xf32>
    %cst_14 = arith.constant dense<0.000000e+00> : vector<1xf32>
    %26 = vector.multi_reduction <add>, %25, %cst_14 [1, 2] : vector<1x256x4xf32> to vector<1xf32>
    %27 = vector.shape_cast %26 : vector<1xf32> to vector<1x1x1xf32>
    %28 = vector.extract %27[0, 0, 0] : f32 from vector<1x1x1xf32>
    %29 = vector.broadcast %28 : f32 to vector<1x1x1xf32>
    %c0_15 = arith.constant 0 : index
    %c0_16 = arith.constant 0 : index
    %c0_17 = arith.constant 0 : index
    %30 = vector.load %arg7[%c0_15, %c0_16, %c0_17] : memref<1x1x1xf32, #tpu.memory_space<vmem>>, vector<1x1x1xf32>
    tpu.vector_store %arg7[%c0_15, %c0_16, %c0_17], %29 {strides = array<i32>} : memref<1x1x1xf32, #tpu.memory_space<vmem>>, vector<1x1x1xf32>,
    %cst_18 = arith.constant dense<0.000000e+00> : vector<8xf32>
    %31 = vector.multi_reduction <add>, %19, %cst_18 [0] : vector<256x8xf32> to vector<8xf32>
    %32 = vector.shape_cast %31 : vector<8xf32> to vector<1x1x8xf32>
    %c0_19 = arith.constant 0 : index
    %c0_20 = arith.constant 0 : index
    %c0_21 = arith.constant 0 : index
    %33 = vector.load %arg8[%c0_19, %c0_20, %c0_21] : memref<1x1x8xf32, #tpu.memory_space<vmem>>, vector<1x1x8xf32>
    tpu.vector_store %arg8[%c0_19, %c0_20, %c0_21], %32 {strides = array<i32>} : memref<1x1x8xf32, #tpu.memory_space<vmem>>, vector<1x1x8xf32>,
    return
  }
  func.func @transform_0(%arg0: i32) -> (i32, i32) {
    %c0_i32 = arith.constant 0 : i32
    %c0_i32_0 = arith.constant 0 : i32
    return %arg0, %c0_i32 : i32, i32
  }
  func.func @transform_1(%arg0: i32) -> (i32, i32) {
    %c0_i32 = arith.constant 0 : i32
    %c0_i32_0 = arith.constant 0 : i32
    %c0_i32_1 = arith.constant 0 : i32
    return %c0_i32, %c0_i32_0 : i32, i32
  }
  func.func @transform_2(%arg0: i32) -> (i32, i32) {
    %c0_i32 = arith.constant 0 : i32
    %c0_i32_0 = arith.constant 0 : i32
    %c0_i32_1 = arith.constant 0 : i32
    return %c0_i32, %c0_i32_0 : i32, i32
  }
  func.func @transform_3(%arg0: i32) -> (i32, i32) {
    %c0_i32 = arith.constant 0 : i32
    %c0_i32_0 = arith.constant 0 : i32
    %c0_i32_1 = arith.constant 0 : i32
    return %c0_i32, %c0_i32_0 : i32, i32
  }
  func.func @transform_4(%arg0: i32) -> (i32, i32) {
    %c0_i32 = arith.constant 0 : i32
    %c0_i32_0 = arith.constant 0 : i32
    return %arg0, %c0_i32 : i32, i32
  }
  func.func @transform_5(%arg0: i32) -> (i32, i32) {
    %c0_i32 = arith.constant 0 : i32
    %c0_i32_0 = arith.constant 0 : i32
    return %arg0, %c0_i32 : i32, i32
  }
  func.func @transform_6(%arg0: i32) -> (i32, i32, i32) {
    %c0_i32 = arith.constant 0 : i32
    %c0_i32_0 = arith.constant 0 : i32
    %c0_i32_1 = arith.constant 0 : i32
    return %arg0, %c0_i32, %c0_i32_0 : i32, i32, i32
  }
  func.func @transform_7(%arg0: i32) -> (i32, i32, i32) {
    %c0_i32 = arith.constant 0 : i32
    %c0_i32_0 = arith.constant 0 : i32
    %c0_i32_1 = arith.constant 0 : i32
    return %arg0, %c0_i32, %c0_i32_0 : i32, i32, i32
  }
}

</mosaic_0001>

<llo_original>
// kernel: tpu_custom_call.1
$region0: #{tpu_custom_call.1}
  #allocation0 [shape = 'u32[]', space=smem, size = 0x4, offset = 0x4, fixed_abs, tag = 'smem constant byte address 0x4 - core index']
  #allocation1 [shape = 'u32[72,128]{1,0:T(1,128)}', space=vmem, size = 0x9000, scoped, tag = 'internal scratch']
  %s0 = inlined_call_operand.vmem [shape: f32[512,4], index: 0, kind: input, shape index: {}]
  %s1 = inlined_call_operand.vmem [shape: f32[8,4], index: 1, kind: input, shape index: {}]
  %s2 = inlined_call_operand.vmem [shape: f32[4,8], index: 2, kind: input, shape index: {}]
  %s3 = inlined_call_operand.vmem [shape: f32[1,8], index: 3, kind: input, shape index: {}]
  %s4 = inlined_call_operand.vmem [shape: f32[512,4], index: 4, kind: output, shape index: {0}]
  %s5 = inlined_call_operand.vmem [shape: s32[512,1], index: 5, kind: output, shape index: {1}]
  %s6 = inlined_call_operand.vmem [shape: f32[2,1,1], index: 6, kind: output, shape index: {2}]
  %s7 = inlined_call_operand.hbm [shape: f32[2,1,8], index: 7, kind: output, shape index: {3}]
  %8 = xla_tuple %s4, %s5, %s6, %s7
  %s9 = sld [smem:[#allocation0]]
  $region73: #{tpu_custom_call.1} parent=0
    _
  %s11 = ssub.s32 1, %s9
  %s12 = scalar_select 0, %s11, %s9
  $region1: #{tpu_custom_call.1} parent=0
    #allocation2 [shape = 'u8[1024]{0}', space=vmem, size = 0x400, scoped, tag = 'output window, operand 3']
    #allocation3 [shape = 's32[2]{0}', space=sflag, size = 0x8, scoped, tag = 'scoped memory for tpu_custom_call.1']
    %13 = vsyncpa [#allocation3], 0
    %s14 = scalar_lea.sflag [#allocation3], 1
    %15 = vsyncpa %s14, 0
    loop: start=0, step=1, limit=4
    $region2: #{tpu_custom_call.1} parent=1 // loop_pre_header
      _
    $region3: #{tpu_custom_call.1} parent=1 // loop_header
      %s17 = sphi 0, %s21
      %p18 = scmp.ge.s32.totalorder %s17, 4
      %s27 = sphi 0, %s29
      %s30 = sphi 0, %s27
      %s31 = sphi 0, %s30
      %s47 = sphi 0, %s31
      %s51 = sphi 0, %s51
      %s53 = sphi 0, %s51
      %s54 = sphi 0, %s53
      %s68 = sphi 0, %s54
      %s72 = sphi 0, %s72
      %s74 = sphi 0, %s72
      %s75 = sphi 0, %s74
      %s89 = sphi 0, %s75
      %s93 = sphi 0, %s93
      %s95 = sphi 0, %s93
      %s96 = sphi 0, %s95
      %s110 = sphi 0, %s96
      %s116 = sphi 0, %s118
      %s119 = sphi 0, %s116
      %s120 = sphi 0, %s119
      %s136 = sphi 0, %s120
      %s142 = sphi 0, %s144
      %s145 = sphi 0, %s142
      %s146 = sphi 0, %s145
      %s162 = sphi 0, %s146
      %s168 = sphi 0, %s170
      %s171 = sphi 0, %s168
      %s172 = sphi 0, %s171
      %s188 = sphi 0, %s172
      %s194 = sphi 0, %s196
      %s197 = sphi 0, %s194
      %s198 = sphi 0, %s197
      %s214 = sphi 0, %s198
    $region4: #{tpu_custom_call.1} parent=1 // loop_header_branch
      %20 = sbr.rel (%p18) target = $region8
    $region5: #{tpu_custom_call.1} parent=1 // loop_body
      %s22 = ssub.s32 %s17, 1
      %s23 = ssub.s32 %s17, 2
      %s24 = sadd.s32 %s17, 1
      %s25 = ssub.s32 %s17, %s24
      %p26 = scmp.eq.s32.totalorder %s25, 0
      %s28 = sadd.s32 %s27, 1
      %s29 = scalar_select %p26, %s27, %s28
      %p32 = pneg %p26
      %p33 = scmp.eq.s32.totalorder %s17, 1
      %p34 = por %p32, %p33
      %p35 = scmp.ne.s32.totalorder %s27, %s30
      %p36 = scmp.eq.s32.totalorder %s17, 0
      %p37 = por %p35, %p36
      %p38 = scmp.ne.s32.totalorder %s27, %s30
      %p39 = scmp.eq.s32.totalorder %s22, 1
      %p40 = por %p38, %p39
      %p41 = scmp.ne.s32.totalorder %s30, %s31
      %p42 = scmp.eq.s32.totalorder %s22, 0
      %p43 = por %p41, %p42
      %p44 = scmp.ne.s32.totalorder %s30, %s31
      %p45 = scmp.eq.s32.totalorder %s23, 1
      %p46 = por %p44, %p45
      %p48 = scmp.ne.s32.totalorder %s31, %s47
      %p49 = scmp.eq.s32.totalorder %s23, 0
      %p50 = por %p48, %p49
      %s52 = sadd.s32 %s51, 1
      %p55 = scmp.eq.s32.totalorder %s17, 1
      %p56 = scmp.ne.s32.totalorder %s51, %s53
      %p57 = scmp.eq.s32.totalorder %s17, 0
      %p58 = por %p56, %p57
      %p59 = scmp.ne.s32.totalorder %s51, %s53
      %p60 = scmp.eq.s32.totalorder %s22, 1
      %p61 = por %p59, %p60
      %p62 = scmp.ne.s32.totalorder %s53, %s54
      %p63 = scmp.eq.s32.totalorder %s22, 0
      %p64 = por %p62, %p63
      %p65 = scmp.ne.s32.totalorder %s53, %s54
      %p66 = scmp.eq.s32.totalorder %s23, 1
      %p67 = por %p65, %p66
      %p69 = scmp.ne.s32.totalorder %s54, %s68
      %p70 = scmp.eq.s32.totalorder %s23, 0
      %p71 = por %p69, %p70
      %s73 = sadd.s32 %s72, 1
      %p76 = scmp.eq.s32.totalorder %s17, 1
      %p77 = scmp.ne.s32.totalorder %s72, %s74
      %p78 = scmp.eq.s32.totalorder %s17, 0
      %p79 = por %p77, %p78
      %p80 = scmp.ne.s32.totalorder %s72, %s74
      %p81 = scmp.eq.s32.totalorder %s22, 1
      %p82 = por %p80, %p81
      %p83 = scmp.ne.s32.totalorder %s74, %s75
      %p84 = scmp.eq.s32.totalorder %s22, 0
      %p85 = por %p83, %p84
      %p86 = scmp.ne.s32.totalorder %s74, %s75
      %p87 = scmp.eq.s32.totalorder %s23, 1
      %p88 = por %p86, %p87
      %p90 = scmp.ne.s32.totalorder %s75, %s89
      %p91 = scmp.eq.s32.totalorder %s23, 0
      %p92 = por %p90, %p91
      %s94 = sadd.s32 %s93, 1
      %p97 = scmp.eq.s32.totalorder %s17, 1
      %p98 = scmp.ne.s32.totalorder %s93, %s95
      %p99 = scmp.eq.s32.totalorder %s17, 0
      %p100 = por %p98, %p99
      %p101 = scmp.ne.s32.totalorder %s93, %s95
      %p102 = scmp.eq.s32.totalorder %s22, 1
      %p103 = por %p101, %p102
      %p104 = scmp.ne.s32.totalorder %s95, %s96
      %p105 = scmp.eq.s32.totalorder %s22, 0
      %p106 = por %p104, %p105
      %p107 = scmp.ne.s32.totalorder %s95, %s96
      %p108 = scmp.eq.s32.totalorder %s23, 1
      %p109 = por %p107, %p108
      %p111 = scmp.ne.s32.totalorder %s96, %s110
      %p112 = scmp.eq.s32.totalorder %s23, 0
      %p113 = por %p111, %p112
      %s114 = ssub.s32 %s17, %s24
      %p115 = scmp.eq.s32.totalorder %s114, 0
      %s117 = sadd.s32 %s116, 1
      %s118 = scalar_select %p115, %s116, %s117
      %p121 = pneg %p115
      %p122 = scmp.eq.s32.totalorder %s17, 1
      %p123 = por %p121, %p122
      %p124 = scmp.ne.s32.totalorder %s116, %s119
      %p125 = scmp.eq.s32.totalorder %s17, 0
      %p126 = por %p124, %p125
      %p127 = scmp.ne.s32.totalorder %s116, %s119
      %p128 = scmp.eq.s32.totalorder %s22, 1
      %p129 = por %p127, %p128
      %p130 = scmp.ne.s32.totalorder %s119, %s120
      %p131 = scmp.eq.s32.totalorder %s22, 0
      %p132 = por %p130, %p131
      %p133 = scmp.ne.s32.totalorder %s119, %s120
      %p134 = scmp.eq.s32.totalorder %s23, 1
      %p135 = por %p133, %p134
      %p137 = scmp.ne.s32.totalorder %s120, %s136
      %p138 = scmp.eq.s32.totalorder %s23, 0
      %p139 = por %p137, %p138
      %s140 = ssub.s32 %s17, %s24
      %p141 = scmp.eq.s32.totalorder %s140, 0
      %s143 = sadd.s32 %s142, 1
      %s144 = scalar_select %p141, %s142, %s143
      %p147 = pneg %p141
      %p148 = scmp.eq.s32.totalorder %s17, 1
      %p149 = por %p147, %p148
      %p150 = scmp.ne.s32.totalorder %s142, %s145
      %p151 = scmp.eq.s32.totalorder %s17, 0
      %p152 = por %p150, %p151
      %p153 = scmp.ne.s32.totalorder %s142, %s145
      %p154 = scmp.eq.s32.totalorder %s22, 1
      %p155 = por %p153, %p154
      %p156 = scmp.ne.s32.totalorder %s145, %s146
      %p157 = scmp.eq.s32.totalorder %s22, 0
      %p158 = por %p156, %p157
      %p159 = scmp.ne.s32.totalorder %s145, %s146
      %p160 = scmp.eq.s32.totalorder %s23, 1
      %p161 = por %p159, %p160
      %p163 = scmp.ne.s32.totalorder %s146, %s162
      %p164 = scmp.eq.s32.totalorder %s23, 0
      %p165 = por %p163, %p164
      %s166 = ssub.s32 %s17, %s24
      %p167 = scmp.eq.s32.totalorder %s166, 0
      %s169 = sadd.s32 %s168, 1
      %s170 = scalar_select %p167, %s168, %s169
      %p173 = pneg %p167
      %p174 = scmp.eq.s32.totalorder %s17, 1
      %p175 = por %p173, %p174
      %p176 = scmp.ne.s32.totalorder %s168, %s171
      %p177 = scmp.eq.s32.totalorder %s17, 0
      %p178 = por %p176, %p177
      %p179 = scmp.ne.s32.totalorder %s168, %s171
      %p180 = scmp.eq.s32.totalorder %s22, 1
      %p181 = por %p179, %p180
      %p182 = scmp.ne.s32.totalorder %s171, %s172
      %p183 = scmp.eq.s32.totalorder %s22, 0
      %p184 = por %p182, %p183
      %p185 = scmp.ne.s32.totalorder %s171, %s172
      %p186 = scmp.eq.s32.totalorder %s23, 1
      %p187 = por %p185, %p186
      %p189 = scmp.ne.s32.totalorder %s172, %s188
      %p190 = scmp.eq.s32.totalorder %s23, 0
      %p191 = por %p189, %p190
      %s192 = ssub.s32 %s17, %s24
      %p193 = scmp.eq.s32.totalorder %s192, 0
      %s195 = sadd.s32 %s194, 1
      %s196 = scalar_select %p193, %s194, %s195
      %p199 = pneg %p193
      %p200 = scmp.eq.s32.totalorder %s17, 1
      %p201 = por %p199, %p200
      %p202 = scmp.ne.s32.totalorder %s194, %s197
      %p203 = scmp.eq.s32.totalorder %s17, 0
      %p204 = por %p202, %p203
      %p205 = scmp.ne.s32.totalorder %s194, %s197
      %p206 = scmp.eq.s32.totalorder %s22, 1
      %p207 = por %p205, %p206
      %p208 = scmp.ne.s32.totalorder %s197, %s198
      %p209 = scmp.eq.s32.totalorder %s22, 0
      %p210 = por %p208, %p209
      %p211 = scmp.ne.s32.totalorder %s197, %s198
      %p212 = scmp.eq.s32.totalorder %s23, 1
      %p213 = por %p211, %p212
      %p215 = scmp.ne.s32.totalorder %s198, %s214
      %p216 = scmp.eq.s32.totalorder %s23, 0
      %p217 = por %p215, %p216
      %p218 = scmp.le.s32.totalorder 1, %s17
      %p219 = scmp.lt.s32.totalorder %s17, 3
      %p220 = pnand %p218, %p219
      %p221 = pneg %p220
      // Predicated region
      $region9: #{tpu_custom_call.1} parent=5 // pred_check
        _
      $region10: #{tpu_custom_call.1} parent=5 // pred_check_branch
        %223 = sbr.rel (%p220) target = $region12
      $region11: #{tpu_custom_call.1} parent=5 // pred_region
        %s224 = ssub.s32 %s17, 1
        // Predicated region
        $region13: #{tpu_custom_call.1} parent=11 // pred_check
          %p225 = pneg %p64
        $region14: #{tpu_custom_call.1} parent=11 // pred_check_branch
          %227 = sbr.rel (%p225) target = $region16
        $region15: #{tpu_custom_call.1} parent=11 // pred_region
          _
        $region16: #{tpu_custom_call.1} parent=11 // pred_fallthru
          _
        // Predicated region
        $region17: #{tpu_custom_call.1} parent=11 // pred_check
          %p228 = pneg %p85
        $region18: #{tpu_custom_call.1} parent=11 // pred_check_branch
          %230 = sbr.rel (%p228) target = $region20
        $region19: #{tpu_custom_call.1} parent=11 // pred_region
          _
        $region20: #{tpu_custom_call.1} parent=11 // pred_fallthru
          _
        // Predicated region
        $region21: #{tpu_custom_call.1} parent=11 // pred_check
          %p231 = pneg %p106
        $region22: #{tpu_custom_call.1} parent=11 // pred_check_branch
          %233 = sbr.rel (%p231) target = $region24
        $region23: #{tpu_custom_call.1} parent=11 // pred_region
          _
        $region24: #{tpu_custom_call.1} parent=11 // pred_fallthru
          _
      $region12: #{tpu_custom_call.1} parent=5 // pred_fallthru
        _
      %p234 = scmp.lt.s32.totalorder %s17, 2
      // Predicated region
      $region25: #{tpu_custom_call.1} parent=5 // pred_check
        %p235 = pneg %p234
      $region26: #{tpu_custom_call.1} parent=5 // pred_check_branch
        %237 = sbr.rel (%p235) target = $region28
      $region27: #{tpu_custom_call.1} parent=5 // pred_region
        // Predicated region
        $region29: #{tpu_custom_call.1} parent=27 // pred_check
          %p238 = pneg %p37
        $region30: #{tpu_custom_call.1} parent=27 // pred_check_branch
          %240 = sbr.rel (%p238) target = $region32
        $region31: #{tpu_custom_call.1} parent=27 // pred_region
          %s241 = smul.u32 32, %s17
          %p242 = scmp.lt.s32.totalorder %s241, 63
          %s243 = scalar_select %p242, %s241, 63
          %s244 = smul.addr %s243, 8
          %s245 = scalar_lea.vmem %s0, %s244
          %s246 = smul.u32 32, %s17
        $region32: #{tpu_custom_call.1} parent=27 // pred_fallthru
          _
      $region28: #{tpu_custom_call.1} parent=5 // pred_fallthru
        _
      %p247 = scmp.le.s32.totalorder 1, %s17
      %p248 = scmp.lt.s32.totalorder %s17, 3
      %p249 = pnand %p247, %p248
      %p250 = pneg %p249
      // Predicated region
      $region33: #{tpu_custom_call.1} parent=5 // pred_check
        _
      $region34: #{tpu_custom_call.1} parent=5 // pred_check_branch
        %252 = sbr.rel (%p249) target = $region36
      $region35: #{tpu_custom_call.1} parent=5 // pred_region
        %s253 = ssub.s32 %s17, 1
        %s254 = smul.u32 32, %s22
        %p255 = scmp.lt.s32.totalorder %s254, 63
        %s256 = scalar_select %p255, %s254, 63
        %s257 = smul.addr %s256, 8
        %s258 = scalar_lea.vmem %s0, %s257
        %p259 = pneg %p43
        %p260 = pneg %p40
        %p261 = pneg %p64
        %p262 = pneg %p61
        %p263 = pneg %p85
        %p264 = pneg %p82
        %p265 = pneg %p106
        %p266 = pneg %p103
        %p267 = pneg %p132
        %p268 = pneg %p129
        %s269 = smul.u32 32, %s22
        %p270 = scmp.lt.s32.totalorder %s269, 63
        %s271 = scalar_select %p270, %s269, 63
        %s272 = smul.addr %s271, 8
        %s273 = scalar_lea.vmem %s4, %s272
        %p274 = pneg %p158
        %p275 = pneg %p155
        %s276 = smul.u32 32, %s22
        %p277 = scmp.lt.s32.totalorder %s276, 63
        %s278 = scalar_select %p277, %s276, 63
        %s279 = smul.addr %s278, 8
        %s280 = scalar_lea.vmem %s5, %s279
        %p281 = pneg %p184
        %p282 = pneg %p181
        %p283 = scmp.lt.s32.totalorder %s22, 1
        %s284 = scalar_select %p283, %s22, 1
        %s285 = scalar_lea.vmem %s6, %s284
        %p286 = pneg %p210
        %p287 = pneg %p207
        %s288 = sand.u32 %s197, 1
        %s289 = scalar_lea.sflag [#allocation3], %s288
        %s290 = sand.u32 %s197, 1
        %s291 = scalar_lea.vmem [#allocation2], %s290
        %s292 = smul.u32 32, %s22
        %p293 = scmp.lt.s32.totalorder %s292, 63
        %s294 = scalar_select %p293, %s292, 63
        %s295 = smul.addr %s294, 8
        %s296 = scalar_lea.vmem %s0, %s295
        %s297 = smul.u32 32, %s22
        %s298 = smul.u32 32, %s22
        %p299 = scmp.lt.s32.totalorder %s298, 63
        %s300 = scalar_select %p299, %s298, 63
        %s301 = smul.addr %s300, 8
        %s302 = scalar_lea.vmem %s4, %s301
        %s303 = smul.u32 32, %s22
        %s304 = smul.u32 32, %s22
        %p305 = scmp.lt.s32.totalorder %s304, 63
        %s306 = scalar_select %p305, %s304, 63
        %s307 = smul.addr %s306, 8
        %s308 = scalar_lea.vmem %s5, %s307
        %s309 = smul.u32 32, %s22
        %p310 = scmp.lt.s32.totalorder %s22, 1
        %s311 = scalar_select %p310, %s22, 1
        %s312 = scalar_lea.vmem %s6, %s311
        %v313 = vld [vmem:[%s296] sm:$0xff]
        %v314 = vld [vmem:[%s296 + $0x8] sm:$0xff]
        %v315 = vld [vmem:[%s296 + $0x10] sm:$0xff]
        %v316 = vld [vmem:[%s296 + $0x18] sm:$0xff]
        %v317 = vld [vmem:[%s296 + $0x20] sm:$0xff]
        %v318 = vld [vmem:[%s296 + $0x28] sm:$0xff]
        %v319 = vld [vmem:[%s296 + $0x30] sm:$0xff]
        %v320 = vld [vmem:[%s296 + $0x38] sm:$0xff]
        %v321 = vld [vmem:[%s296 + $0x40] sm:$0xff]
        %v322 = vld [vmem:[%s296 + $0x48] sm:$0xff]
        %v323 = vld [vmem:[%s296 + $0x50] sm:$0xff]
        %v324 = vld [vmem:[%s296 + $0x58] sm:$0xff]
        %v325 = vld [vmem:[%s296 + $0x60] sm:$0xff]
        %v326 = vld [vmem:[%s296 + $0x68] sm:$0xff]
        %v327 = vld [vmem:[%s296 + $0x70] sm:$0xff]
        %v328 = vld [vmem:[%s296 + $0x78] sm:$0xff]
        %v329 = vld [vmem:[%s296 + $0x80] sm:$0xff]
        %v330 = vld [vmem:[%s296 + $0x88] sm:$0xff]
        %v331 = vld [vmem:[%s296 + $0x90] sm:$0xff]
        %v332 = vld [vmem:[%s296 + $0x98] sm:$0xff]
        %v333 = vld [vmem:[%s296 + $0xa0] sm:$0xff]
        %v334 = vld [vmem:[%s296 + $0xa8] sm:$0xff]
        %v335 = vld [vmem:[%s296 + $0xb0] sm:$0xff]
        %v336 = vld [vmem:[%s296 + $0xb8] sm:$0xff]
        %v337 = vld [vmem:[%s296 + $0xc0] sm:$0xff]
        %v338 = vld [vmem:[%s296 + $0xc8] sm:$0xff]
        %v339 = vld [vmem:[%s296 + $0xd0] sm:$0xff]
        %v340 = vld [vmem:[%s296 + $0xd8] sm:$0xff]
        %v341 = vld [vmem:[%s296 + $0xe0] sm:$0xff]
        %v342 = vld [vmem:[%s296 + $0xe8] sm:$0xff]
        %v343 = vld [vmem:[%s296 + $0xf0] sm:$0xff]
        %v344 = vld [vmem:[%s296 + $0xf8] sm:$0xff]
        %v345 = vld [vmem:[%s1] sm:$0xff]
        %v346 = vld [vmem:[%s2] sm:$0xf]
        %v347 = vld [vmem:[%s3] sm:$0x1]
        %vm348 = vcmask 31744
        %v350 = vsel %vm348, %v313, 0
        %v353 = vsel %vm348, %v314, 0
        %v356 = vsel %vm348, %v315, 0
        %v359 = vsel %vm348, %v316, 0
        %v362 = vsel %vm348, %v317, 0
        %v365 = vsel %vm348, %v318, 0
        %v368 = vsel %vm348, %v319, 0
        %v371 = vsel %vm348, %v320, 0
        %v374 = vsel %vm348, %v321, 0
        %v377 = vsel %vm348, %v322, 0
        %v380 = vsel %vm348, %v323, 0
        %v383 = vsel %vm348, %v324, 0
        %v386 = vsel %vm348, %v325, 0
        %v389 = vsel %vm348, %v326, 0
        %v392 = vsel %vm348, %v327, 0
        %v395 = vsel %vm348, %v328, 0
        %v398 = vsel %vm348, %v329, 0
        %v401 = vsel %vm348, %v330, 0
        %v404 = vsel %vm348, %v331, 0
        %v407 = vsel %vm348, %v332, 0
        %v410 = vsel %vm348, %v333, 0
        %v413 = vsel %vm348, %v334, 0
        %v416 = vsel %vm348, %v335, 0
        %v419 = vsel %vm348, %v336, 0
        %v422 = vsel %vm348, %v337, 0
        %v425 = vsel %vm348, %v338, 0
        %v428 = vsel %vm348, %v339, 0
        %v431 = vsel %vm348, %v340, 0
        %v434 = vsel %vm348, %v341, 0
        %v437 = vsel %vm348, %v342, 0
        %v440 = vsel %vm348, %v343, 0
        %v443 = vsel %vm348, %v344, 0
        %vm445 = vcmask 1043456
        %v447 = vsel %vm445, %v346, 0
        %449 = vmatpush.msra.mxu0 0.0
        %450 = vmatpush.msra.mxu0 0.0
        %451 = vmatpush.msra.mxu0 0.0
        %452 = vmatpush.msra.mxu0 0.0
        %453 = vmatpush.msra.mxu0 0.0
        %454 = vmatpush.msra.mxu0 0.0
        %455 = vmatpush.msra.mxu0 0.0
        %456 = vmatpush.msra.mxu0 0.0
        %457 = vmatpush.msra.mxu0 0.0
        %458 = vmatpush.msra.mxu0 0.0
        %459 = vmatpush.msra.mxu0 0.0
        %460 = vmatpush.msra.mxu0 0.0
        %461 = vmatpush.msra.mxu0 0.0
        %462 = vmatpush.msra.mxu0 0.0
        %463 = vmatpush.msra.mxu0 0.0
        %464 = vmatpush.msra.mxu0 %v447
        %465 = vmatmul.f32.gmra.mxu0 %v350
        %v466 = vpop.f32.mrf.mxu0
        %v467 = vadd.f32 0.0, %v466
        %468 = vmatmul.f32.gmra.mxu0 %v353
        %v469 = vpop.f32.mrf.mxu0
        %v470 = vadd.f32 0.0, %v469
        %471 = vmatmul.f32.gmra.mxu0 %v356
        %v472 = vpop.f32.mrf.mxu0
        %v473 = vadd.f32 0.0, %v472
        %474 = vmatmul.f32.gmra.mxu0 %v359
        %v475 = vpop.f32.mrf.mxu0
        %v476 = vadd.f32 0.0, %v475
        %477 = vmatmul.f32.gmra.mxu0 %v362
        %v478 = vpop.f32.mrf.mxu0
        %v479 = vadd.f32 0.0, %v478
        %480 = vmatmul.f32.gmra.mxu0 %v365
        %v481 = vpop.f32.mrf.mxu0
        %v482 = vadd.f32 0.0, %v481
        %483 = vmatmul.f32.gmra.mxu0 %v368
        %v484 = vpop.f32.mrf.mxu0
        %v485 = vadd.f32 0.0, %v484
        %486 = vmatmul.f32.gmra.mxu0 %v371
        %v487 = vpop.f32.mrf.mxu0
        %v488 = vadd.f32 0.0, %v487
        %489 = vmatmul.f32.gmra.mxu0 %v374
        %v490 = vpop.f32.mrf.mxu0
        %v491 = vadd.f32 0.0, %v490
        %492 = vmatmul.f32.gmra.mxu0 %v377
        %v493 = vpop.f32.mrf.mxu0
        %v494 = vadd.f32 0.0, %v493
        %495 = vmatmul.f32.gmra.mxu0 %v380
        %v496 = vpop.f32.mrf.mxu0
        %v497 = vadd.f32 0.0, %v496
        %498 = vmatmul.f32.gmra.mxu0 %v383
        %v499 = vpop.f32.mrf.mxu0
        %v500 = vadd.f32 0.0, %v499
        %501 = vmatmul.f32.gmra.mxu0 %v386
        %v502 = vpop.f32.mrf.mxu0
        %v503 = vadd.f32 0.0, %v502
        %504 = vmatmul.f32.gmra.mxu0 %v389
        %v505 = vpop.f32.mrf.mxu0
        %v506 = vadd.f32 0.0, %v505
        %507 = vmatmul.f32.gmra.mxu0 %v392
        %v508 = vpop.f32.mrf.mxu0
        %v509 = vadd.f32 0.0, %v508
        %510 = vmatmul.f32.gmra.mxu0 %v395
        %v511 = vpop.f32.mrf.mxu0
        %v512 = vadd.f32 0.0, %v511
        %513 = vmatmul.f32.gmra.mxu0 %v398
        %v514 = vpop.f32.mrf.mxu0
        %v515 = vadd.f32 0.0, %v514
        %516 = vmatmul.f32.gmra.mxu0 %v401
        %v517 = vpop.f32.mrf.mxu0
        %v518 = vadd.f32 0.0, %v517
        %519 = vmatmul.f32.gmra.mxu0 %v404
        %v520 = vpop.f32.mrf.mxu0
        %v521 = vadd.f32 0.0, %v520
        %522 = vmatmul.f32.gmra.mxu0 %v407
        %v523 = vpop.f32.mrf.mxu0
        %v524 = vadd.f32 0.0, %v523
        %525 = vmatmul.f32.gmra.mxu0 %v410
        %v526 = vpop.f32.mrf.mxu0
        %v527 = vadd.f32 0.0, %v526
        %528 = vmatmul.f32.gmra.mxu0 %v413
        %v529 = vpop.f32.mrf.mxu0
        %v530 = vadd.f32 0.0, %v529
        %531 = vmatmul.f32.gmra.mxu0 %v416
        %v532 = vpop.f32.mrf.mxu0
        %v533 = vadd.f32 0.0, %v532
        %534 = vmatmul.f32.gmra.mxu0 %v419
        %v535 = vpop.f32.mrf.mxu0
        %v536 = vadd.f32 0.0, %v535
        %537 = vmatmul.f32.gmra.mxu0 %v422
        %v538 = vpop.f32.mrf.mxu0
        %v539 = vadd.f32 0.0, %v538
        %540 = vmatmul.f32.gmra.mxu0 %v425
        %v541 = vpop.f32.mrf.mxu0
        %v542 = vadd.f32 0.0, %v541
        %543 = vmatmul.f32.gmra.mxu0 %v428
        %v544 = vpop.f32.mrf.mxu0
        %v545 = vadd.f32 0.0, %v544
        %546 = vmatmul.f32.gmra.mxu0 %v431
        %v547 = vpop.f32.mrf.mxu0
        %v548 = vadd.f32 0.0, %v547
        %549 = vmatmul.f32.gmra.mxu0 %v434
        %v550 = vpop.f32.mrf.mxu0
        %v551 = vadd.f32 0.0, %v550
        %552 = vmatmul.f32.gmra.mxu0 %v437
        %v553 = vpop.f32.mrf.mxu0
        %v554 = vadd.f32 0.0, %v553
        %555 = vmatmul.f32.gmra.mxu0 %v440
        %v556 = vpop.f32.mrf.mxu0
        %v557 = vadd.f32 0.0, %v556
        %558 = vmatmul.f32.gmra.mxu0 %v443
        %v559 = vpop.f32.mrf.mxu0
        %v560 = vadd.f32 0.0, %v559
        %561 = vdwg.mxu0
        %v563 = vperm.slane %v347, 0
        %v565 = vadd.f32 %v563, %v467
        %v566 = vadd.f32 %v563, %v470
        %v567 = vadd.f32 %v563, %v473
        %v568 = vadd.f32 %v563, %v476
        %v569 = vadd.f32 %v563, %v479
        %v570 = vadd.f32 %v563, %v482
        %v571 = vadd.f32 %v563, %v485
        %v572 = vadd.f32 %v563, %v488
        %v573 = vadd.f32 %v563, %v491
        %v574 = vadd.f32 %v563, %v494
        %v575 = vadd.f32 %v563, %v497
        %v576 = vadd.f32 %v563, %v500
        %v577 = vadd.f32 %v563, %v503
        %v578 = vadd.f32 %v563, %v506
        %v579 = vadd.f32 %v563, %v509
        %v580 = vadd.f32 %v563, %v512
        %v581 = vadd.f32 %v563, %v515
        %v582 = vadd.f32 %v563, %v518
        %v583 = vadd.f32 %v563, %v521
        %v584 = vadd.f32 %v563, %v524
        %v585 = vadd.f32 %v563, %v527
        %v586 = vadd.f32 %v563, %v530
        %v587 = vadd.f32 %v563, %v533
        %v588 = vadd.f32 %v563, %v536
        %v589 = vadd.f32 %v563, %v539
        %v590 = vadd.f32 %v563, %v542
        %v591 = vadd.f32 %v563, %v545
        %v592 = vadd.f32 %v563, %v548
        %v593 = vadd.f32 %v563, %v551
        %v594 = vadd.f32 %v563, %v554
        %v595 = vadd.f32 %v563, %v557
        %v596 = vadd.f32 %v563, %v560
        %v597 = vlaneseq
        %v598 = vand.u32 %v597, 127
        %vm599 = vcmask 64512
        %v600 = vsel %vm599, %v565, inf
        %601 = vmin.xlane.f32.xlu0 %v600
        %v602 = vpop.xlane.xlu0 %601
        %v603 = vsel %vm599, %v566, inf
        %604 = vmin.xlane.f32.xlu0 %v603
        %v605 = vpop.xlane.xlu0 %604
        %v606 = vsel %vm599, %v567, inf
        %607 = vmin.xlane.f32.xlu0 %v606
        %v608 = vpop.xlane.xlu0 %607
        %v609 = vsel %vm599, %v568, inf
        %610 = vmin.xlane.f32.xlu0 %v609
        %v611 = vpop.xlane.xlu0 %610
        %v612 = vsel %vm599, %v569, inf
        %613 = vmin.xlane.f32.xlu0 %v612
        %v614 = vpop.xlane.xlu0 %613
        %v615 = vsel %vm599, %v570, inf
        %616 = vmin.xlane.f32.xlu0 %v615
        %v617 = vpop.xlane.xlu0 %616
        %v618 = vsel %vm599, %v571, inf
        %619 = vmin.xlane.f32.xlu0 %v618
        %v620 = vpop.xlane.xlu0 %619
        %v621 = vsel %vm599, %v572, inf
        %622 = vmin.xlane.f32.xlu0 %v621
        %v623 = vpop.xlane.xlu0 %622
        %v624 = vsel %vm599, %v573, inf
        %625 = vmin.xlane.f32.xlu0 %v624
        %v626 = vpop.xlane.xlu0 %625
        %v627 = vsel %vm599, %v574, inf
        %628 = vmin.xlane.f32.xlu0 %v627
        %v629 = vpop.xlane.xlu0 %628
        %v630 = vsel %vm599, %v575, inf
        %631 = vmin.xlane.f32.xlu0 %v630
        %v632 = vpop.xlane.xlu0 %631
        %v633 = vsel %vm599, %v576, inf
        %634 = vmin.xlane.f32.xlu0 %v633
        %v635 = vpop.xlane.xlu0 %634
        %v636 = vsel %vm599, %v577, inf
        %637 = vmin.xlane.f32.xlu0 %v636
        %v638 = vpop.xlane.xlu0 %637
        %v639 = vsel %vm599, %v578, inf
        %640 = vmin.xlane.f32.xlu0 %v639
        %v641 = vpop.xlane.xlu0 %640
        %v642 = vsel %vm599, %v579, inf
        %643 = vmin.xlane.f32.xlu0 %v642
        %v644 = vpop.xlane.xlu0 %643
        %v645 = vsel %vm599, %v580, inf
        %646 = vmin.xlane.f32.xlu0 %v645
        %v647 = vpop.xlane.xlu0 %646
        %v648 = vsel %vm599, %v581, inf
        %649 = vmin.xlane.f32.xlu0 %v648
        %v650 = vpop.xlane.xlu0 %649
        %v651 = vsel %vm599, %v582, inf
        %652 = vmin.xlane.f32.xlu0 %v651
        %v653 = vpop.xlane.xlu0 %652
        %v654 = vsel %vm599, %v583, inf
        %655 = vmin.xlane.f32.xlu0 %v654
        %v656 = vpop.xlane.xlu0 %655
        %v657 = vsel %vm599, %v584, inf
        %658 = vmin.xlane.f32.xlu0 %v657
        %v659 = vpop.xlane.xlu0 %658
        %v660 = vsel %vm599, %v585, inf
        %661 = vmin.xlane.f32.xlu0 %v660
        %v662 = vpop.xlane.xlu0 %661
        %v663 = vsel %vm599, %v586, inf
        %664 = vmin.xlane.f32.xlu0 %v663
        %v665 = vpop.xlane.xlu0 %664
        %v666 = vsel %vm599, %v587, inf
        %667 = vmin.xlane.f32.xlu0 %v666
        %v668 = vpop.xlane.xlu0 %667
        %v669 = vsel %vm599, %v588, inf
        %670 = vmin.xlane.f32.xlu0 %v669
        %v671 = vpop.xlane.xlu0 %670
        %v672 = vsel %vm599, %v589, inf
        %673 = vmin.xlane.f32.xlu0 %v672
        %v674 = vpop.xlane.xlu0 %673
        %v675 = vsel %vm599, %v590, inf
        %676 = vmin.xlane.f32.xlu0 %v675
        %v677 = vpop.xlane.xlu0 %676
        %v678 = vsel %vm599, %v591, inf
        %679 = vmin.xlane.f32.xlu0 %v678
        %v680 = vpop.xlane.xlu0 %679
        %v681 = vsel %vm599, %v592, inf
        %682 = vmin.xlane.f32.xlu0 %v681
        %v683 = vpop.xlane.xlu0 %682
        %v684 = vsel %vm599, %v593, inf
        %685 = vmin.xlane.f32.xlu0 %v684
        %v686 = vpop.xlane.xlu0 %685
        %v687 = vsel %vm599, %v594, inf
        %688 = vmin.xlane.f32.xlu0 %v687
        %v689 = vpop.xlane.xlu0 %688
        %v690 = vsel %vm599, %v595, inf
        %691 = vmin.xlane.f32.xlu0 %v690
        %v692 = vpop.xlane.xlu0 %691
        %v693 = vsel %vm599, %v596, inf
        %694 = vmin.xlane.f32.xlu0 %v693
        %v695 = vpop.xlane.xlu0 %694
        %vm696 = vcmp.eq.f32.partialorder %v565, %v602
        %vm697 = vcmp.eq.f32.partialorder %v566, %v605
        %vm698 = vcmp.eq.f32.partialorder %v567, %v608
        %vm699 = vcmp.eq.f32.partialorder %v568, %v611
        %vm700 = vcmp.eq.f32.partialorder %v569, %v614
        %vm701 = vcmp.eq.f32.partialorder %v570, %v617
        %vm702 = vcmp.eq.f32.partialorder %v571, %v620
        %vm703 = vcmp.eq.f32.partialorder %v572, %v623
        %vm704 = vcmp.eq.f32.partialorder %v573, %v626
        %vm705 = vcmp.eq.f32.partialorder %v574, %v629
        %vm706 = vcmp.eq.f32.partialorder %v575, %v632
        %vm707 = vcmp.eq.f32.partialorder %v576, %v635
        %vm708 = vcmp.eq.f32.partialorder %v577, %v638
        %vm709 = vcmp.eq.f32.partialorder %v578, %v641
        %vm710 = vcmp.eq.f32.partialorder %v579, %v644
        %vm711 = vcmp.eq.f32.partialorder %v580, %v647
        %vm712 = vcmp.eq.f32.partialorder %v581, %v650
        %vm713 = vcmp.eq.f32.partialorder %v582, %v653
        %vm714 = vcmp.eq.f32.partialorder %v583, %v656
        %vm715 = vcmp.eq.f32.partialorder %v584, %v659
        %vm716 = vcmp.eq.f32.partialorder %v585, %v662
        %vm717 = vcmp.eq.f32.partialorder %v586, %v665
        %vm718 = vcmp.eq.f32.partialorder %v587, %v668
        %vm719 = vcmp.eq.f32.partialorder %v588, %v671
        %vm720 = vcmp.eq.f32.partialorder %v589, %v674
        %vm721 = vcmp.eq.f32.partialorder %v590, %v677
        %vm722 = vcmp.eq.f32.partialorder %v591, %v680
        %vm723 = vcmp.eq.f32.partialorder %v592, %v683
        %vm724 = vcmp.eq.f32.partialorder %v593, %v686
        %vm725 = vcmp.eq.f32.partialorder %v594, %v689
        %vm726 = vcmp.eq.f32.partialorder %v595, %v692
        %vm727 = vcmp.eq.f32.partialorder %v596, %v695
        %v728 = vsel %vm696, %v598, 8
        %v729 = vsel %vm697, %v598, 8
        %v730 = vsel %vm698, %v598, 8
        %v731 = vsel %vm699, %v598, 8
        %v732 = vsel %vm700, %v598, 8
        %v733 = vsel %vm701, %v598, 8
        %v734 = vsel %vm702, %v598, 8
        %v735 = vsel %vm703, %v598, 8
        %v736 = vsel %vm704, %v598, 8
        %v737 = vsel %vm705, %v598, 8
        %v738 = vsel %vm706, %v598, 8
        %v739 = vsel %vm707, %v598, 8
        %v740 = vsel %vm708, %v598, 8
        %v741 = vsel %vm709, %v598, 8
        %v742 = vsel %vm710, %v598, 8
        %v743 = vsel %vm711, %v598, 8
        %v744 = vsel %vm712, %v598, 8
        %v745 = vsel %vm713, %v598, 8
        %v746 = vsel %vm714, %v598, 8
        %v747 = vsel %vm715, %v598, 8
        %v748 = vsel %vm716, %v598, 8
        %v749 = vsel %vm717, %v598, 8
        %v750 = vsel %vm718, %v598, 8
        %v751 = vsel %vm719, %v598, 8
        %v752 = vsel %vm720, %v598, 8
        %v753 = vsel %vm721, %v598, 8
        %v754 = vsel %vm722, %v598, 8
        %v755 = vsel %vm723, %v598, 8
        %v756 = vsel %vm724, %v598, 8
        %v757 = vsel %vm725, %v598, 8
        %v758 = vsel %vm726, %v598, 8
        %v759 = vsel %vm727, %v598, 8
        %v760 = vsel %vm599, %v728, 2147483647
        %v761 = vand.u32 %v760, 65535
        %v762 = vshra.s32 %v760, 16
        %v763 = vcvt.s32.f32 %v761
        %v764 = vcvt.s32.f32 %v762
        %765 = vmin.xlane.f32.xlu0 %v764
        %v766 = vpop.xlane.xlu0 %765
        %vm767 = vcmp.eq.f32.partialorder %v764, %v766
        %v768 = vsel %vm767, %v763, inf
        %769 = vmin.xlane.f32.xlu0 %v768
        %v770 = vpop.xlane.xlu0 %769
        %v771 = vcvt.f32.s32 %v770
        %v772 = vcvt.f32.s32 %v766
        %v773 = vshll.u32 %v772, 16
        %v774 = vadd.s32 %v773, %v771
        %v775 = vsel %vm599, %v729, 2147483647
        %v776 = vand.u32 %v775, 65535
        %v777 = vshra.s32 %v775, 16
        %v778 = vcvt.s32.f32 %v776
        %v779 = vcvt.s32.f32 %v777
        %780 = vmin.xlane.f32.xlu0 %v779
        %v781 = vpop.xlane.xlu0 %780
        %vm782 = vcmp.eq.f32.partialorder %v779, %v781
        %v783 = vsel %vm782, %v778, inf
        %784 = vmin.xlane.f32.xlu0 %v783
        %v785 = vpop.xlane.xlu0 %784
        %v786 = vcvt.f32.s32 %v785
        %v787 = vcvt.f32.s32 %v781
        %v788 = vshll.u32 %v787, 16
        %v789 = vadd.s32 %v788, %v786
        %v790 = vsel %vm599, %v730, 2147483647
        %v791 = vand.u32 %v790, 65535
        %v792 = vshra.s32 %v790, 16
        %v793 = vcvt.s32.f32 %v791
        %v794 = vcvt.s32.f32 %v792
        %795 = vmin.xlane.f32.xlu0 %v794
        %v796 = vpop.xlane.xlu0 %795
        %vm797 = vcmp.eq.f32.partialorder %v794, %v796
        %v798 = vsel %vm797, %v793, inf
        %799 = vmin.xlane.f32.xlu0 %v798
        %v800 = vpop.xlane.xlu0 %799
        %v801 = vcvt.f32.s32 %v800
        %v802 = vcvt.f32.s32 %v796
        %v803 = vshll.u32 %v802, 16
        %v804 = vadd.s32 %v803, %v801
        %v805 = vsel %vm599, %v731, 2147483647
        %v806 = vand.u32 %v805, 65535
        %v807 = vshra.s32 %v805, 16
        %v808 = vcvt.s32.f32 %v806
        %v809 = vcvt.s32.f32 %v807
        %810 = vmin.xlane.f32.xlu0 %v809
        %v811 = vpop.xlane.xlu0 %810
        %vm812 = vcmp.eq.f32.partialorder %v809, %v811
        %v813 = vsel %vm812, %v808, inf
        %814 = vmin.xlane.f32.xlu0 %v813
        %v815 = vpop.xlane.xlu0 %814
        %v816 = vcvt.f32.s32 %v815
        %v817 = vcvt.f32.s32 %v811
        %v818 = vshll.u32 %v817, 16
        %v819 = vadd.s32 %v818, %v816
        %v820 = vsel %vm599, %v732, 2147483647
        %v821 = vand.u32 %v820, 65535
        %v822 = vshra.s32 %v820, 16
        %v823 = vcvt.s32.f32 %v821
        %v824 = vcvt.s32.f32 %v822
        %825 = vmin.xlane.f32.xlu0 %v824
        %v826 = vpop.xlane.xlu0 %825
        %vm827 = vcmp.eq.f32.partialorder %v824, %v826
        %v828 = vsel %vm827, %v823, inf
        %829 = vmin.xlane.f32.xlu0 %v828
        %v830 = vpop.xlane.xlu0 %829
        %v831 = vcvt.f32.s32 %v830
        %v832 = vcvt.f32.s32 %v826
        %v833 = vshll.u32 %v832, 16
        %v834 = vadd.s32 %v833, %v831
        %v835 = vsel %vm599, %v733, 2147483647
        %v836 = vand.u32 %v835, 65535
        %v837 = vshra.s32 %v835, 16
        %v838 = vcvt.s32.f32 %v836
        %v839 = vcvt.s32.f32 %v837
        %840 = vmin.xlane.f32.xlu0 %v839
        %v841 = vpop.xlane.xlu0 %840
        %vm842 = vcmp.eq.f32.partialorder %v839, %v841
        %v843 = vsel %vm842, %v838, inf
        %844 = vmin.xlane.f32.xlu0 %v843
        %v845 = vpop.xlane.xlu0 %844
        %v846 = vcvt.f32.s32 %v845
        %v847 = vcvt.f32.s32 %v841
        %v848 = vshll.u32 %v847, 16
        %v849 = vadd.s32 %v848, %v846
        %v850 = vsel %vm599, %v734, 2147483647
        %v851 = vand.u32 %v850, 65535
        %v852 = vshra.s32 %v850, 16
        %v853 = vcvt.s32.f32 %v851
        %v854 = vcvt.s32.f32 %v852
        %855 = vmin.xlane.f32.xlu0 %v854
        %v856 = vpop.xlane.xlu0 %855
        %vm857 = vcmp.eq.f32.partialorder %v854, %v856
        %v858 = vsel %vm857, %v853, inf
        %859 = vmin.xlane.f32.xlu0 %v858
        %v860 = vpop.xlane.xlu0 %859
        %v861 = vcvt.f32.s32 %v860
        %v862 = vcvt.f32.s32 %v856
        %v863 = vshll.u32 %v862, 16
        %v864 = vadd.s32 %v863, %v861
        %v865 = vsel %vm599, %v735, 2147483647
        %v866 = vand.u32 %v865, 65535
        %v867 = vshra.s32 %v865, 16
        %v868 = vcvt.s32.f32 %v866
        %v869 = vcvt.s32.f32 %v867
        %870 = vmin.xlane.f32.xlu0 %v869
        %v871 = vpop.xlane.xlu0 %870
        %vm872 = vcmp.eq.f32.partialorder %v869, %v871
        %v873 = vsel %vm872, %v868, inf
        %874 = vmin.xlane.f32.xlu0 %v873
        %v875 = vpop.xlane.xlu0 %874
        %v876 = vcvt.f32.s32 %v875
        %v877 = vcvt.f32.s32 %v871
        %v878 = vshll.u32 %v877, 16
        %v879 = vadd.s32 %v878, %v876
        %v880 = vsel %vm599, %v736, 2147483647
        %v881 = vand.u32 %v880, 65535
        %v882 = vshra.s32 %v880, 16
        %v883 = vcvt.s32.f32 %v881
        %v884 = vcvt.s32.f32 %v882
        %885 = vmin.xlane.f32.xlu0 %v884
        %v886 = vpop.xlane.xlu0 %885
        %vm887 = vcmp.eq.f32.partialorder %v884, %v886
        %v888 = vsel %vm887, %v883, inf
        %889 = vmin.xlane.f32.xlu0 %v888
        %v890 = vpop.xlane.xlu0 %889
        %v891 = vcvt.f32.s32 %v890
        %v892 = vcvt.f32.s32 %v886
        %v893 = vshll.u32 %v892, 16
        %v894 = vadd.s32 %v893, %v891
        %v895 = vsel %vm599, %v737, 2147483647
        %v896 = vand.u32 %v895, 65535
        %v897 = vshra.s32 %v895, 16
        %v898 = vcvt.s32.f32 %v896
        %v899 = vcvt.s32.f32 %v897
        %900 = vmin.xlane.f32.xlu0 %v899
        %v901 = vpop.xlane.xlu0 %900
        %vm902 = vcmp.eq.f32.partialorder %v899, %v901
        %v903 = vsel %vm902, %v898, inf
        %904 = vmin.xlane.f32.xlu0 %v903
        %v905 = vpop.xlane.xlu0 %904
        %v906 = vcvt.f32.s32 %v905
        %v907 = vcvt.f32.s32 %v901
        %v908 = vshll.u32 %v907, 16
        %v909 = vadd.s32 %v908, %v906
        %v910 = vsel %vm599, %v738, 2147483647
        %v911 = vand.u32 %v910, 65535
        %v912 = vshra.s32 %v910, 16
        %v913 = vcvt.s32.f32 %v911
        %v914 = vcvt.s32.f32 %v912
        %915 = vmin.xlane.f32.xlu0 %v914
        %v916 = vpop.xlane.xlu0 %915
        %vm917 = vcmp.eq.f32.partialorder %v914, %v916
        %v918 = vsel %vm917, %v913, inf
        %919 = vmin.xlane.f32.xlu0 %v918
        %v920 = vpop.xlane.xlu0 %919
        %v921 = vcvt.f32.s32 %v920
        %v922 = vcvt.f32.s32 %v916
        %v923 = vshll.u32 %v922, 16
        %v924 = vadd.s32 %v923, %v921
        %v925 = vsel %vm599, %v739, 2147483647
        %v926 = vand.u32 %v925, 65535
        %v927 = vshra.s32 %v925, 16
        %v928 = vcvt.s32.f32 %v926
        %v929 = vcvt.s32.f32 %v927
        %930 = vmin.xlane.f32.xlu0 %v929
        %v931 = vpop.xlane.xlu0 %930
        %vm932 = vcmp.eq.f32.partialorder %v929, %v931
        %v933 = vsel %vm932, %v928, inf
        %934 = vmin.xlane.f32.xlu0 %v933
        %v935 = vpop.xlane.xlu0 %934
        %v936 = vcvt.f32.s32 %v935
        %v937 = vcvt.f32.s32 %v931
        %v938 = vshll.u32 %v937, 16
        %v939 = vadd.s32 %v938, %v936
        %v940 = vsel %vm599, %v740, 2147483647
        %v941 = vand.u32 %v940, 65535
        %v942 = vshra.s32 %v940, 16
        %v943 = vcvt.s32.f32 %v941
        %v944 = vcvt.s32.f32 %v942
        %945 = vmin.xlane.f32.xlu0 %v944
        %v946 = vpop.xlane.xlu0 %945
        %vm947 = vcmp.eq.f32.partialorder %v944, %v946
        %v948 = vsel %vm947, %v943, inf
        %949 = vmin.xlane.f32.xlu0 %v948
        %v950 = vpop.xlane.xlu0 %949
        %v951 = vcvt.f32.s32 %v950
        %v952 = vcvt.f32.s32 %v946
        %v953 = vshll.u32 %v952, 16
        %v954 = vadd.s32 %v953, %v951
        %v955 = vsel %vm599, %v741, 2147483647
        %v956 = vand.u32 %v955, 65535
        %v957 = vshra.s32 %v955, 16
        %v958 = vcvt.s32.f32 %v956
        %v959 = vcvt.s32.f32 %v957
        %960 = vmin.xlane.f32.xlu0 %v959
        %v961 = vpop.xlane.xlu0 %960
        %vm962 = vcmp.eq.f32.partialorder %v959, %v961
        %v963 = vsel %vm962, %v958, inf
        %964 = vmin.xlane.f32.xlu0 %v963
        %v965 = vpop.xlane.xlu0 %964
        %v966 = vcvt.f32.s32 %v965
        %v967 = vcvt.f32.s32 %v961
        %v968 = vshll.u32 %v967, 16
        %v969 = vadd.s32 %v968, %v966
        %v970 = vsel %vm599, %v742, 2147483647
        %v971 = vand.u32 %v970, 65535
        %v972 = vshra.s32 %v970, 16
        %v973 = vcvt.s32.f32 %v971
        %v974 = vcvt.s32.f32 %v972
        %975 = vmin.xlane.f32.xlu0 %v974
        %v976 = vpop.xlane.xlu0 %975
        %vm977 = vcmp.eq.f32.partialorder %v974, %v976
        %v978 = vsel %vm977, %v973, inf
        %979 = vmin.xlane.f32.xlu0 %v978
        %v980 = vpop.xlane.xlu0 %979
        %v981 = vcvt.f32.s32 %v980
        %v982 = vcvt.f32.s32 %v976
        %v983 = vshll.u32 %v982, 16
        %v984 = vadd.s32 %v983, %v981
        %v985 = vsel %vm599, %v743, 2147483647
        %v986 = vand.u32 %v985, 65535
        %v987 = vshra.s32 %v985, 16
        %v988 = vcvt.s32.f32 %v986
        %v989 = vcvt.s32.f32 %v987
        %990 = vmin.xlane.f32.xlu0 %v989
        %v991 = vpop.xlane.xlu0 %990
        %vm992 = vcmp.eq.f32.partialorder %v989, %v991
        %v993 = vsel %vm992, %v988, inf
        %994 = vmin.xlane.f32.xlu0 %v993
        %v995 = vpop.xlane.xlu0 %994
        %v996 = vcvt.f32.s32 %v995
        %v997 = vcvt.f32.s32 %v991
        %v998 = vshll.u32 %v997, 16
        %v999 = vadd.s32 %v998, %v996
        %v1000 = vsel %vm599, %v744, 2147483647
        %v1001 = vand.u32 %v1000, 65535
        %v1002 = vshra.s32 %v1000, 16
        %v1003 = vcvt.s32.f32 %v1001
        %v1004 = vcvt.s32.f32 %v1002
        %1005 = vmin.xlane.f32.xlu0 %v1004
        %v1006 = vpop.xlane.xlu0 %1005
        %vm1007 = vcmp.eq.f32.partialorder %v1004, %v1006
        %v1008 = vsel %vm1007, %v1003, inf
        %1009 = vmin.xlane.f32.xlu0 %v1008
        %v1010 = vpop.xlane.xlu0 %1009
        %v1011 = vcvt.f32.s32 %v1010
        %v1012 = vcvt.f32.s32 %v1006
        %v1013 = vshll.u32 %v1012, 16
        %v1014 = vadd.s32 %v1013, %v1011
        %v1015 = vsel %vm599, %v745, 2147483647
        %v1016 = vand.u32 %v1015, 65535
        %v1017 = vshra.s32 %v1015, 16
        %v1018 = vcvt.s32.f32 %v1016
        %v1019 = vcvt.s32.f32 %v1017
        %1020 = vmin.xlane.f32.xlu0 %v1019
        %v1021 = vpop.xlane.xlu0 %1020
        %vm1022 = vcmp.eq.f32.partialorder %v1019, %v1021
        %v1023 = vsel %vm1022, %v1018, inf
        %1024 = vmin.xlane.f32.xlu0 %v1023
        %v1025 = vpop.xlane.xlu0 %1024
        %v1026 = vcvt.f32.s32 %v1025
        %v1027 = vcvt.f32.s32 %v1021
        %v1028 = vshll.u32 %v1027, 16
        %v1029 = vadd.s32 %v1028, %v1026
        %v1030 = vsel %vm599, %v746, 2147483647
        %v1031 = vand.u32 %v1030, 65535
        %v1032 = vshra.s32 %v1030, 16
        %v1033 = vcvt.s32.f32 %v1031
        %v1034 = vcvt.s32.f32 %v1032
        %1035 = vmin.xlane.f32.xlu0 %v1034
        %v1036 = vpop.xlane.xlu0 %1035
        %vm1037 = vcmp.eq.f32.partialorder %v1034, %v1036
        %v1038 = vsel %vm1037, %v1033, inf
        %1039 = vmin.xlane.f32.xlu0 %v1038
        %v1040 = vpop.xlane.xlu0 %1039
        %v1041 = vcvt.f32.s32 %v1040
        %v1042 = vcvt.f32.s32 %v1036
        %v1043 = vshll.u32 %v1042, 16
        %v1044 = vadd.s32 %v1043, %v1041
        %v1045 = vsel %vm599, %v747, 2147483647
        %v1046 = vand.u32 %v1045, 65535
        %v1047 = vshra.s32 %v1045, 16
        %v1048 = vcvt.s32.f32 %v1046
        %v1049 = vcvt.s32.f32 %v1047
        %1050 = vmin.xlane.f32.xlu0 %v1049
        %v1051 = vpop.xlane.xlu0 %1050
        %vm1052 = vcmp.eq.f32.partialorder %v1049, %v1051
        %v1053 = vsel %vm1052, %v1048, inf
        %1054 = vmin.xlane.f32.xlu0 %v1053
        %v1055 = vpop.xlane.xlu0 %1054
        %v1056 = vcvt.f32.s32 %v1055
        %v1057 = vcvt.f32.s32 %v1051
        %v1058 = vshll.u32 %v1057, 16
        %v1059 = vadd.s32 %v1058, %v1056
        %v1060 = vsel %vm599, %v748, 2147483647
        %v1061 = vand.u32 %v1060, 65535
        %v1062 = vshra.s32 %v1060, 16
        %v1063 = vcvt.s32.f32 %v1061
        %v1064 = vcvt.s32.f32 %v1062
        %1065 = vmin.xlane.f32.xlu0 %v1064
        %v1066 = vpop.xlane.xlu0 %1065
        %vm1067 = vcmp.eq.f32.partialorder %v1064, %v1066
        %v1068 = vsel %vm1067, %v1063, inf
        %1069 = vmin.xlane.f32.xlu0 %v1068
        %v1070 = vpop.xlane.xlu0 %1069
        %v1071 = vcvt.f32.s32 %v1070
        %v1072 = vcvt.f32.s32 %v1066
        %v1073 = vshll.u32 %v1072, 16
        %v1074 = vadd.s32 %v1073, %v1071
        %v1075 = vsel %vm599, %v749, 2147483647
        %v1076 = vand.u32 %v1075, 65535
        %v1077 = vshra.s32 %v1075, 16
        %v1078 = vcvt.s32.f32 %v1076
        %v1079 = vcvt.s32.f32 %v1077
        %1080 = vmin.xlane.f32.xlu0 %v1079
        %v1081 = vpop.xlane.xlu0 %1080
        %vm1082 = vcmp.eq.f32.partialorder %v1079, %v1081
        %v1083 = vsel %vm1082, %v1078, inf
        %1084 = vmin.xlane.f32.xlu0 %v1083
        %v1085 = vpop.xlane.xlu0 %1084
        %v1086 = vcvt.f32.s32 %v1085
        %v1087 = vcvt.f32.s32 %v1081
        %v1088 = vshll.u32 %v1087, 16
        %v1089 = vadd.s32 %v1088, %v1086
        %v1090 = vsel %vm599, %v750, 2147483647
        %v1091 = vand.u32 %v1090, 65535
        %v1092 = vshra.s32 %v1090, 16
        %v1093 = vcvt.s32.f32 %v1091
        %v1094 = vcvt.s32.f32 %v1092
        %1095 = vmin.xlane.f32.xlu0 %v1094
        %v1096 = vpop.xlane.xlu0 %1095
        %vm1097 = vcmp.eq.f32.partialorder %v1094, %v1096
        %v1098 = vsel %vm1097, %v1093, inf
        %1099 = vmin.xlane.f32.xlu0 %v1098
        %v1100 = vpop.xlane.xlu0 %1099
        %v1101 = vcvt.f32.s32 %v1100
        %v1102 = vcvt.f32.s32 %v1096
        %v1103 = vshll.u32 %v1102, 16
        %v1104 = vadd.s32 %v1103, %v1101
        %v1105 = vsel %vm599, %v751, 2147483647
        %v1106 = vand.u32 %v1105, 65535
        %v1107 = vshra.s32 %v1105, 16
        %v1108 = vcvt.s32.f32 %v1106
        %v1109 = vcvt.s32.f32 %v1107
        %1110 = vmin.xlane.f32.xlu0 %v1109
        %v1111 = vpop.xlane.xlu0 %1110
        %vm1112 = vcmp.eq.f32.partialorder %v1109, %v1111
        %v1113 = vsel %vm1112, %v1108, inf
        %1114 = vmin.xlane.f32.xlu0 %v1113
        %v1115 = vpop.xlane.xlu0 %1114
        %v1116 = vcvt.f32.s32 %v1115
        %v1117 = vcvt.f32.s32 %v1111
        %v1118 = vshll.u32 %v1117, 16
        %v1119 = vadd.s32 %v1118, %v1116
        %v1120 = vsel %vm599, %v752, 2147483647
        %v1121 = vand.u32 %v1120, 65535
        %v1122 = vshra.s32 %v1120, 16
        %v1123 = vcvt.s32.f32 %v1121
        %v1124 = vcvt.s32.f32 %v1122
        %1125 = vmin.xlane.f32.xlu0 %v1124
        %v1126 = vpop.xlane.xlu0 %1125
        %vm1127 = vcmp.eq.f32.partialorder %v1124, %v1126
        %v1128 = vsel %vm1127, %v1123, inf
        %1129 = vmin.xlane.f32.xlu0 %v1128
        %v1130 = vpop.xlane.xlu0 %1129
        %v1131 = vcvt.f32.s32 %v1130
        %v1132 = vcvt.f32.s32 %v1126
        %v1133 = vshll.u32 %v1132, 16
        %v1134 = vadd.s32 %v1133, %v1131
        %v1135 = vsel %vm599, %v753, 2147483647
        %v1136 = vand.u32 %v1135, 65535
        %v1137 = vshra.s32 %v1135, 16
        %v1138 = vcvt.s32.f32 %v1136
        %v1139 = vcvt.s32.f32 %v1137
        %1140 = vmin.xlane.f32.xlu0 %v1139
        %v1141 = vpop.xlane.xlu0 %1140
        %vm1142 = vcmp.eq.f32.partialorder %v1139, %v1141
        %v1143 = vsel %vm1142, %v1138, inf
        %1144 = vmin.xlane.f32.xlu0 %v1143
        %v1145 = vpop.xlane.xlu0 %1144
        %v1146 = vcvt.f32.s32 %v1145
        %v1147 = vcvt.f32.s32 %v1141
        %v1148 = vshll.u32 %v1147, 16
        %v1149 = vadd.s32 %v1148, %v1146
        %v1150 = vsel %vm599, %v754, 2147483647
        %v1151 = vand.u32 %v1150, 65535
        %v1152 = vshra.s32 %v1150, 16
        %v1153 = vcvt.s32.f32 %v1151
        %v1154 = vcvt.s32.f32 %v1152
        %1155 = vmin.xlane.f32.xlu0 %v1154
        %v1156 = vpop.xlane.xlu0 %1155
        %vm1157 = vcmp.eq.f32.partialorder %v1154, %v1156
        %v1158 = vsel %vm1157, %v1153, inf
        %1159 = vmin.xlane.f32.xlu0 %v1158
        %v1160 = vpop.xlane.xlu0 %1159
        %v1161 = vcvt.f32.s32 %v1160
        %v1162 = vcvt.f32.s32 %v1156
        %v1163 = vshll.u32 %v1162, 16
        %v1164 = vadd.s32 %v1163, %v1161
        %v1165 = vsel %vm599, %v755, 2147483647
        %v1166 = vand.u32 %v1165, 65535
        %v1167 = vshra.s32 %v1165, 16
        %v1168 = vcvt.s32.f32 %v1166
        %v1169 = vcvt.s32.f32 %v1167
        %1170 = vmin.xlane.f32.xlu0 %v1169
        %v1171 = vpop.xlane.xlu0 %1170
        %vm1172 = vcmp.eq.f32.partialorder %v1169, %v1171
        %v1173 = vsel %vm1172, %v1168, inf
        %1174 = vmin.xlane.f32.xlu0 %v1173
        %v1175 = vpop.xlane.xlu0 %1174
        %v1176 = vcvt.f32.s32 %v1175
        %v1177 = vcvt.f32.s32 %v1171
        %v1178 = vshll.u32 %v1177, 16
        %v1179 = vadd.s32 %v1178, %v1176
        %v1180 = vsel %vm599, %v756, 2147483647
        %v1181 = vand.u32 %v1180, 65535
        %v1182 = vshra.s32 %v1180, 16
        %v1183 = vcvt.s32.f32 %v1181
        %v1184 = vcvt.s32.f32 %v1182
        %1185 = vmin.xlane.f32.xlu0 %v1184
        %v1186 = vpop.xlane.xlu0 %1185
        %vm1187 = vcmp.eq.f32.partialorder %v1184, %v1186
        %v1188 = vsel %vm1187, %v1183, inf
        %1189 = vmin.xlane.f32.xlu0 %v1188
        %v1190 = vpop.xlane.xlu0 %1189
        %v1191 = vcvt.f32.s32 %v1190
        %v1192 = vcvt.f32.s32 %v1186
        %v1193 = vshll.u32 %v1192, 16
        %v1194 = vadd.s32 %v1193, %v1191
        %v1195 = vsel %vm599, %v757, 2147483647
        %v1196 = vand.u32 %v1195, 65535
        %v1197 = vshra.s32 %v1195, 16
        %v1198 = vcvt.s32.f32 %v1196
        %v1199 = vcvt.s32.f32 %v1197
        %1200 = vmin.xlane.f32.xlu0 %v1199
        %v1201 = vpop.xlane.xlu0 %1200
        %vm1202 = vcmp.eq.f32.partialorder %v1199, %v1201
        %v1203 = vsel %vm1202, %v1198, inf
        %1204 = vmin.xlane.f32.xlu0 %v1203
        %v1205 = vpop.xlane.xlu0 %1204
        %v1206 = vcvt.f32.s32 %v1205
        %v1207 = vcvt.f32.s32 %v1201
        %v1208 = vshll.u32 %v1207, 16
        %v1209 = vadd.s32 %v1208, %v1206
        %v1210 = vsel %vm599, %v758, 2147483647
        %v1211 = vand.u32 %v1210, 65535
        %v1212 = vshra.s32 %v1210, 16
        %v1213 = vcvt.s32.f32 %v1211
        %v1214 = vcvt.s32.f32 %v1212
        %1215 = vmin.xlane.f32.xlu0 %v1214
        %v1216 = vpop.xlane.xlu0 %1215
        %vm1217 = vcmp.eq.f32.partialorder %v1214, %v1216
        %v1218 = vsel %vm1217, %v1213, inf
        %1219 = vmin.xlane.f32.xlu0 %v1218
        %v1220 = vpop.xlane.xlu0 %1219
        %v1221 = vcvt.f32.s32 %v1220
        %v1222 = vcvt.f32.s32 %v1216
        %v1223 = vshll.u32 %v1222, 16
        %v1224 = vadd.s32 %v1223, %v1221
        %v1225 = vsel %vm599, %v759, 2147483647
        %v1226 = vand.u32 %v1225, 65535
        %v1227 = vshra.s32 %v1225, 16
        %v1228 = vcvt.s32.f32 %v1226
        %v1229 = vcvt.s32.f32 %v1227
        %1230 = vmin.xlane.f32.xlu0 %v1229
        %v1231 = vpop.xlane.xlu0 %1230
        %vm1232 = vcmp.eq.f32.partialorder %v1229, %v1231
        %v1233 = vsel %vm1232, %v1228, inf
        %1234 = vmin.xlane.f32.xlu0 %v1233
        %v1235 = vpop.xlane.xlu0 %1234
        %v1236 = vcvt.f32.s32 %v1235
        %v1237 = vcvt.f32.s32 %v1231
        %v1238 = vshll.u32 %v1237, 16
        %v1239 = vadd.s32 %v1238, %v1236
        %vm1240 = vcmp.eq.s32.totalorder %v598, %v774
        %vm1241 = vcmp.eq.s32.totalorder %v598, %v789
        %vm1242 = vcmp.eq.s32.totalorder %v598, %v804
        %vm1243 = vcmp.eq.s32.totalorder %v598, %v819
        %vm1244 = vcmp.eq.s32.totalorder %v598, %v834
        %vm1245 = vcmp.eq.s32.totalorder %v598, %v849
        %vm1246 = vcmp.eq.s32.totalorder %v598, %v864
        %vm1247 = vcmp.eq.s32.totalorder %v598, %v879
        %vm1248 = vcmp.eq.s32.totalorder %v598, %v894
        %vm1249 = vcmp.eq.s32.totalorder %v598, %v909
        %vm1250 = vcmp.eq.s32.totalorder %v598, %v924
        %vm1251 = vcmp.eq.s32.totalorder %v598, %v939
        %vm1252 = vcmp.eq.s32.totalorder %v598, %v954
        %vm1253 = vcmp.eq.s32.totalorder %v598, %v969
        %vm1254 = vcmp.eq.s32.totalorder %v598, %v984
        %vm1255 = vcmp.eq.s32.totalorder %v598, %v999
        %vm1256 = vcmp.eq.s32.totalorder %v598, %v1014
        %vm1257 = vcmp.eq.s32.totalorder %v598, %v1029
        %vm1258 = vcmp.eq.s32.totalorder %v598, %v1044
        %vm1259 = vcmp.eq.s32.totalorder %v598, %v1059
        %vm1260 = vcmp.eq.s32.totalorder %v598, %v1074
        %vm1261 = vcmp.eq.s32.totalorder %v598, %v1089
        %vm1262 = vcmp.eq.s32.totalorder %v598, %v1104
        %vm1263 = vcmp.eq.s32.totalorder %v598, %v1119
        %vm1264 = vcmp.eq.s32.totalorder %v598, %v1134
        %vm1265 = vcmp.eq.s32.totalorder %v598, %v1149
        %vm1266 = vcmp.eq.s32.totalorder %v598, %v1164
        %vm1267 = vcmp.eq.s32.totalorder %v598, %v1179
        %vm1268 = vcmp.eq.s32.totalorder %v598, %v1194
        %vm1269 = vcmp.eq.s32.totalorder %v598, %v1209
        %vm1270 = vcmp.eq.s32.totalorder %v598, %v1224
        %vm1271 = vcmp.eq.s32.totalorder %v598, %v1239
        %v1272 = vsel %vm1240, 1, 0
        %v1273 = vsel %vm1241, 1, 0
        %v1274 = vsel %vm1242, 1, 0
        %v1275 = vsel %vm1243, 1, 0
        %v1276 = vsel %vm1244, 1, 0
        %v1277 = vsel %vm1245, 1, 0
        %v1278 = vsel %vm1246, 1, 0
        %v1279 = vsel %vm1247, 1, 0
        %v1280 = vsel %vm1248, 1, 0
        %v1281 = vsel %vm1249, 1, 0
        %v1282 = vsel %vm1250, 1, 0
        %v1283 = vsel %vm1251, 1, 0
        %v1284 = vsel %vm1252, 1, 0
        %v1285 = vsel %vm1253, 1, 0
        %v1286 = vsel %vm1254, 1, 0
        %v1287 = vsel %vm1255, 1, 0
        %v1288 = vsel %vm1256, 1, 0
        %v1289 = vsel %vm1257, 1, 0
        %v1290 = vsel %vm1258, 1, 0
        %v1291 = vsel %vm1259, 1, 0
        %v1292 = vsel %vm1260, 1, 0
        %v1293 = vsel %vm1261, 1, 0
        %v1294 = vsel %vm1262, 1, 0
        %v1295 = vsel %vm1263, 1, 0
        %v1296 = vsel %vm1264, 1, 0
        %v1297 = vsel %vm1265, 1, 0
        %v1298 = vsel %vm1266, 1, 0
        %v1299 = vsel %vm1267, 1, 0
        %v1300 = vsel %vm1268, 1, 0
        %v1301 = vsel %vm1269, 1, 0
        %v1302 = vsel %vm1270, 1, 0
        %v1303 = vsel %vm1271, 1, 0
        %v1304 = vcvt.s32.f32 %v1272
        %v1305 = vcvt.s32.f32 %v1273
        %v1306 = vcvt.s32.f32 %v1274
        %v1307 = vcvt.s32.f32 %v1275
        %v1308 = vcvt.s32.f32 %v1276
        %v1309 = vcvt.s32.f32 %v1277
        %v1310 = vcvt.s32.f32 %v1278
        %v1311 = vcvt.s32.f32 %v1279
        %v1312 = vcvt.s32.f32 %v1280
        %v1313 = vcvt.s32.f32 %v1281
        %v1314 = vcvt.s32.f32 %v1282
        %v1315 = vcvt.s32.f32 %v1283
        %v1316 = vcvt.s32.f32 %v1284
        %v1317 = vcvt.s32.f32 %v1285
        %v1318 = vcvt.s32.f32 %v1286
        %v1319 = vcvt.s32.f32 %v1287
        %v1320 = vcvt.s32.f32 %v1288
        %v1321 = vcvt.s32.f32 %v1289
        %v1322 = vcvt.s32.f32 %v1290
        %v1323 = vcvt.s32.f32 %v1291
        %v1324 = vcvt.s32.f32 %v1292
        %v1325 = vcvt.s32.f32 %v1293
        %v1326 = vcvt.s32.f32 %v1294
        %v1327 = vcvt.s32.f32 %v1295
        %v1328 = vcvt.s32.f32 %v1296
        %v1329 = vcvt.s32.f32 %v1297
        %v1330 = vcvt.s32.f32 %v1298
        %v1331 = vcvt.s32.f32 %v1299
        %v1332 = vcvt.s32.f32 %v1300
        %v1333 = vcvt.s32.f32 %v1301
        %v1334 = vcvt.s32.f32 %v1302
        %v1335 = vcvt.s32.f32 %v1303
        %v1337 = vsel %vm599, %v1304, 0
        %v1340 = vsel %vm599, %v1305, 0
        %v1343 = vsel %vm599, %v1306, 0
        %v1346 = vsel %vm599, %v1307, 0
        %v1349 = vsel %vm599, %v1308, 0
        %v1352 = vsel %vm599, %v1309, 0
        %v1355 = vsel %vm599, %v1310, 0
        %v1358 = vsel %vm599, %v1311, 0
        %v1361 = vsel %vm599, %v1312, 0
        %v1364 = vsel %vm599, %v1313, 0
        %v1367 = vsel %vm599, %v1314, 0
        %v1370 = vsel %vm599, %v1315, 0
        %v1373 = vsel %vm599, %v1316, 0
        %v1376 = vsel %vm599, %v1317, 0
        %v1379 = vsel %vm599, %v1318, 0
        %v1382 = vsel %vm599, %v1319, 0
        %v1385 = vsel %vm599, %v1320, 0
        %v1388 = vsel %vm599, %v1321, 0
        %v1391 = vsel %vm599, %v1322, 0
        %v1394 = vsel %vm599, %v1323, 0
        %v1397 = vsel %vm599, %v1324, 0
        %v1400 = vsel %vm599, %v1325, 0
        %v1403 = vsel %vm599, %v1326, 0
        %v1406 = vsel %vm599, %v1327, 0
        %v1409 = vsel %vm599, %v1328, 0
        %v1412 = vsel %vm599, %v1329, 0
        %v1415 = vsel %vm599, %v1330, 0
        %v1418 = vsel %vm599, %v1331, 0
        %v1421 = vsel %vm599, %v1332, 0
        %v1424 = vsel %vm599, %v1333, 0
        %v1427 = vsel %vm599, %v1334, 0
        %v1430 = vsel %vm599, %v1335, 0
        %1432 = vmatpush.msra.mxu0 0.0
        %1433 = vmatpush.msra.mxu0 0.0
        %1434 = vmatpush.msra.mxu0 0.0
        %1435 = vmatpush.msra.mxu0 0.0
        %1436 = vmatpush.msra.mxu0 0.0
        %1437 = vmatpush.msra.mxu0 0.0
        %1438 = vmatpush.msra.mxu0 0.0
        %1439 = vmatpush.msra.mxu0 0.0
        %1440 = vmatpush.msra.mxu0 0.0
        %1441 = vmatpush.msra.mxu0 0.0
        %1442 = vmatpush.msra.mxu0 0.0
        %1443 = vmatpush.msra.mxu0 0.0
        %1444 = vmatpush.msra.mxu0 0.0
        %1445 = vmatpush.msra.mxu0 0.0
        %1446 = vmatpush.msra.mxu0 0.0
        %1447 = vmatpush.msra.mxu0 %v345
        %1448 = vmatmul.f32.gmra.mxu0 %v1337
        %v1449 = vpop.f32.mrf.mxu0
        %v1450 = vadd.f32 0.0, %v1449
        %1451 = vmatmul.f32.gmra.mxu0 %v1340
        %v1452 = vpop.f32.mrf.mxu0
        %v1453 = vadd.f32 0.0, %v1452
        %1454 = vmatmul.f32.gmra.mxu0 %v1343
        %v1455 = vpop.f32.mrf.mxu0
        %v1456 = vadd.f32 0.0, %v1455
        %1457 = vmatmul.f32.gmra.mxu0 %v1346
        %v1458 = vpop.f32.mrf.mxu0
        %v1459 = vadd.f32 0.0, %v1458
        %1460 = vmatmul.f32.gmra.mxu0 %v1349
        %v1461 = vpop.f32.mrf.mxu0
        %v1462 = vadd.f32 0.0, %v1461
        %1463 = vmatmul.f32.gmra.mxu0 %v1352
        %v1464 = vpop.f32.mrf.mxu0
        %v1465 = vadd.f32 0.0, %v1464
        %1466 = vmatmul.f32.gmra.mxu0 %v1355
        %v1467 = vpop.f32.mrf.mxu0
        %v1468 = vadd.f32 0.0, %v1467
        %1469 = vmatmul.f32.gmra.mxu0 %v1358
        %v1470 = vpop.f32.mrf.mxu0
        %v1471 = vadd.f32 0.0, %v1470
        %1472 = vmatmul.f32.gmra.mxu0 %v1361
        %v1473 = vpop.f32.mrf.mxu0
        %v1474 = vadd.f32 0.0, %v1473
        %1475 = vmatmul.f32.gmra.mxu0 %v1364
        %v1476 = vpop.f32.mrf.mxu0
        %v1477 = vadd.f32 0.0, %v1476
        %1478 = vmatmul.f32.gmra.mxu0 %v1367
        %v1479 = vpop.f32.mrf.mxu0
        %v1480 = vadd.f32 0.0, %v1479
        %1481 = vmatmul.f32.gmra.mxu0 %v1370
        %v1482 = vpop.f32.mrf.mxu0
        %v1483 = vadd.f32 0.0, %v1482
        %1484 = vmatmul.f32.gmra.mxu0 %v1373
        %v1485 = vpop.f32.mrf.mxu0
        %v1486 = vadd.f32 0.0, %v1485
        %1487 = vmatmul.f32.gmra.mxu0 %v1376
        %v1488 = vpop.f32.mrf.mxu0
        %v1489 = vadd.f32 0.0, %v1488
        %1490 = vmatmul.f32.gmra.mxu0 %v1379
        %v1491 = vpop.f32.mrf.mxu0
        %v1492 = vadd.f32 0.0, %v1491
        %1493 = vmatmul.f32.gmra.mxu0 %v1382
        %v1494 = vpop.f32.mrf.mxu0
        %v1495 = vadd.f32 0.0, %v1494
        %1496 = vmatmul.f32.gmra.mxu0 %v1385
        %v1497 = vpop.f32.mrf.mxu0
        %v1498 = vadd.f32 0.0, %v1497
        %1499 = vmatmul.f32.gmra.mxu0 %v1388
        %v1500 = vpop.f32.mrf.mxu0
        %v1501 = vadd.f32 0.0, %v1500
        %1502 = vmatmul.f32.gmra.mxu0 %v1391
        %v1503 = vpop.f32.mrf.mxu0
        %v1504 = vadd.f32 0.0, %v1503
        %1505 = vmatmul.f32.gmra.mxu0 %v1394
        %v1506 = vpop.f32.mrf.mxu0
        %v1507 = vadd.f32 0.0, %v1506
        %1508 = vmatmul.f32.gmra.mxu0 %v1397
        %v1509 = vpop.f32.mrf.mxu0
        %v1510 = vadd.f32 0.0, %v1509
        %1511 = vmatmul.f32.gmra.mxu0 %v1400
        %v1512 = vpop.f32.mrf.mxu0
        %v1513 = vadd.f32 0.0, %v1512
        %1514 = vmatmul.f32.gmra.mxu0 %v1403
        %v1515 = vpop.f32.mrf.mxu0
        %v1516 = vadd.f32 0.0, %v1515
        %1517 = vmatmul.f32.gmra.mxu0 %v1406
        %v1518 = vpop.f32.mrf.mxu0
        %v1519 = vadd.f32 0.0, %v1518
        %1520 = vmatmul.f32.gmra.mxu0 %v1409
        %v1521 = vpop.f32.mrf.mxu0
        %v1522 = vadd.f32 0.0, %v1521
        %1523 = vmatmul.f32.gmra.mxu0 %v1412
        %v1524 = vpop.f32.mrf.mxu0
        %v1525 = vadd.f32 0.0, %v1524
        %1526 = vmatmul.f32.gmra.mxu0 %v1415
        %v1527 = vpop.f32.mrf.mxu0
        %v1528 = vadd.f32 0.0, %v1527
        %1529 = vmatmul.f32.gmra.mxu0 %v1418
        %v1530 = vpop.f32.mrf.mxu0
        %v1531 = vadd.f32 0.0, %v1530
        %1532 = vmatmul.f32.gmra.mxu0 %v1421
        %v1533 = vpop.f32.mrf.mxu0
        %v1534 = vadd.f32 0.0, %v1533
        %1535 = vmatmul.f32.gmra.mxu0 %v1424
        %v1536 = vpop.f32.mrf.mxu0
        %v1537 = vadd.f32 0.0, %v1536
        %1538 = vmatmul.f32.gmra.mxu0 %v1427
        %v1539 = vpop.f32.mrf.mxu0
        %v1540 = vadd.f32 0.0, %v1539
        %1541 = vmatmul.f32.gmra.mxu0 %v1430
        %v1542 = vpop.f32.mrf.mxu0
        %v1543 = vadd.f32 0.0, %v1542
        %1544 = vdwg.mxu0
        %1545 = vst.msk [vmem:[%s302] sm:$0xff] %vm348, %v1450
        %1546 = vst.msk [vmem:[%s302 + $0x8] sm:$0xff] %vm348, %v1453
        %1547 = vst.msk [vmem:[%s302 + $0x10] sm:$0xff] %vm348, %v1456
        %1548 = vst.msk [vmem:[%s302 + $0x18] sm:$0xff] %vm348, %v1459
        %1549 = vst.msk [vmem:[%s302 + $0x20] sm:$0xff] %vm348, %v1462
        %1550 = vst.msk [vmem:[%s302 + $0x28] sm:$0xff] %vm348, %v1465
        %1551 = vst.msk [vmem:[%s302 + $0x30] sm:$0xff] %vm348, %v1468
        %1552 = vst.msk [vmem:[%s302 + $0x38] sm:$0xff] %vm348, %v1471
        %1553 = vst.msk [vmem:[%s302 + $0x40] sm:$0xff] %vm348, %v1474
        %1554 = vst.msk [vmem:[%s302 + $0x48] sm:$0xff] %vm348, %v1477
        %1555 = vst.msk [vmem:[%s302 + $0x50] sm:$0xff] %vm348, %v1480
        %1556 = vst.msk [vmem:[%s302 + $0x58] sm:$0xff] %vm348, %v1483
        %1557 = vst.msk [vmem:[%s302 + $0x60] sm:$0xff] %vm348, %v1486
        %1558 = vst.msk [vmem:[%s302 + $0x68] sm:$0xff] %vm348, %v1489
        %1559 = vst.msk [vmem:[%s302 + $0x70] sm:$0xff] %vm348, %v1492
        %1560 = vst.msk [vmem:[%s302 + $0x78] sm:$0xff] %vm348, %v1495
        %1561 = vst.msk [vmem:[%s302 + $0x80] sm:$0xff] %vm348, %v1498
        %1562 = vst.msk [vmem:[%s302 + $0x88] sm:$0xff] %vm348, %v1501
        %1563 = vst.msk [vmem:[%s302 + $0x90] sm:$0xff] %vm348, %v1504
        %1564 = vst.msk [vmem:[%s302 + $0x98] sm:$0xff] %vm348, %v1507
        %1565 = vst.msk [vmem:[%s302 + $0xa0] sm:$0xff] %vm348, %v1510
        %1566 = vst.msk [vmem:[%s302 + $0xa8] sm:$0xff] %vm348, %v1513
        %1567 = vst.msk [vmem:[%s302 + $0xb0] sm:$0xff] %vm348, %v1516
        %1568 = vst.msk [vmem:[%s302 + $0xb8] sm:$0xff] %vm348, %v1519
        %1569 = vst.msk [vmem:[%s302 + $0xc0] sm:$0xff] %vm348, %v1522
        %1570 = vst.msk [vmem:[%s302 + $0xc8] sm:$0xff] %vm348, %v1525
        %1571 = vst.msk [vmem:[%s302 + $0xd0] sm:$0xff] %vm348, %v1528
        %1572 = vst.msk [vmem:[%s302 + $0xd8] sm:$0xff] %vm348, %v1531
        %1573 = vst.msk [vmem:[%s302 + $0xe0] sm:$0xff] %vm348, %v1534
        %1574 = vst.msk [vmem:[%s302 + $0xe8] sm:$0xff] %vm348, %v1537
        %1575 = vst.msk [vmem:[%s302 + $0xf0] sm:$0xff] %vm348, %v1540
        %1576 = vst.msk [vmem:[%s302 + $0xf8] sm:$0xff] %vm348, %v1543
        %vm1577 = vcmask 7168
        %1578 = vst.msk [vmem:[%s308] sm:$0xff] %vm1577, %v774
        %1579 = vst.msk [vmem:[%s308 + $0x8] sm:$0xff] %vm1577, %v789
        %1580 = vst.msk [vmem:[%s308 + $0x10] sm:$0xff] %vm1577, %v804
        %1581 = vst.msk [vmem:[%s308 + $0x18] sm:$0xff] %vm1577, %v819
        %1582 = vst.msk [vmem:[%s308 + $0x20] sm:$0xff] %vm1577, %v834
        %1583 = vst.msk [vmem:[%s308 + $0x28] sm:$0xff] %vm1577, %v849
        %1584 = vst.msk [vmem:[%s308 + $0x30] sm:$0xff] %vm1577, %v864
        %1585 = vst.msk [vmem:[%s308 + $0x38] sm:$0xff] %vm1577, %v879
        %1586 = vst.msk [vmem:[%s308 + $0x40] sm:$0xff] %vm1577, %v894
        %1587 = vst.msk [vmem:[%s308 + $0x48] sm:$0xff] %vm1577, %v909
        %1588 = vst.msk [vmem:[%s308 + $0x50] sm:$0xff] %vm1577, %v924
        %1589 = vst.msk [vmem:[%s308 + $0x58] sm:$0xff] %vm1577, %v939
        %1590 = vst.msk [vmem:[%s308 + $0x60] sm:$0xff] %vm1577, %v954
        %1591 = vst.msk [vmem:[%s308 + $0x68] sm:$0xff] %vm1577, %v969
        %1592 = vst.msk [vmem:[%s308 + $0x70] sm:$0xff] %vm1577, %v984
        %1593 = vst.msk [vmem:[%s308 + $0x78] sm:$0xff] %vm1577, %v999
        %1594 = vst.msk [vmem:[%s308 + $0x80] sm:$0xff] %vm1577, %v1014
        %1595 = vst.msk [vmem:[%s308 + $0x88] sm:$0xff] %vm1577, %v1029
        %1596 = vst.msk [vmem:[%s308 + $0x90] sm:$0xff] %vm1577, %v1044
        %1597 = vst.msk [vmem:[%s308 + $0x98] sm:$0xff] %vm1577, %v1059
        %1598 = vst.msk [vmem:[%s308 + $0xa0] sm:$0xff] %vm1577, %v1074
        %1599 = vst.msk [vmem:[%s308 + $0xa8] sm:$0xff] %vm1577, %v1089
        %1600 = vst.msk [vmem:[%s308 + $0xb0] sm:$0xff] %vm1577, %v1104
        %1601 = vst.msk [vmem:[%s308 + $0xb8] sm:$0xff] %vm1577, %v1119
        %1602 = vst.msk [vmem:[%s308 + $0xc0] sm:$0xff] %vm1577, %v1134
        %1603 = vst.msk [vmem:[%s308 + $0xc8] sm:$0xff] %vm1577, %v1149
        %1604 = vst.msk [vmem:[%s308 + $0xd0] sm:$0xff] %vm1577, %v1164
        %1605 = vst.msk [vmem:[%s308 + $0xd8] sm:$0xff] %vm1577, %v1179
        %1606 = vst.msk [vmem:[%s308 + $0xe0] sm:$0xff] %vm1577, %v1194
        %1607 = vst.msk [vmem:[%s308 + $0xe8] sm:$0xff] %vm1577, %v1209
        %1608 = vst.msk [vmem:[%s308 + $0xf0] sm:$0xff] %vm1577, %v1224
        %1609 = vst.msk [vmem:[%s308 + $0xf8] sm:$0xff] %vm1577, %v1239
        %v1610 = vsub.f32 %v1450, %v313
        %v1611 = vsub.f32 %v1453, %v314
        %v1612 = vsub.f32 %v1456, %v315
        %v1613 = vsub.f32 %v1459, %v316
        %v1614 = vsub.f32 %v1462, %v317
        %v1615 = vsub.f32 %v1465, %v318
        %v1616 = vsub.f32 %v1468, %v319
        %v1617 = vsub.f32 %v1471, %v320
        %v1618 = vsub.f32 %v1474, %v321
        %v1619 = vsub.f32 %v1477, %v322
        %v1620 = vsub.f32 %v1480, %v323
        %v1621 = vsub.f32 %v1483, %v324
        %v1622 = vsub.f32 %v1486, %v325
        %v1623 = vsub.f32 %v1489, %v326
        %v1624 = vsub.f32 %v1492, %v327
        %v1625 = vsub.f32 %v1495, %v328
        %v1626 = vsub.f32 %v1498, %v329
        %v1627 = vsub.f32 %v1501, %v330
        %v1628 = vsub.f32 %v1504, %v331
        %v1629 = vsub.f32 %v1507, %v332
        %v1630 = vsub.f32 %v1510, %v333
        %v1631 = vsub.f32 %v1513, %v334
        %v1632 = vsub.f32 %v1516, %v335
        %v1633 = vsub.f32 %v1519, %v336
        %v1634 = vsub.f32 %v1522, %v337
        %v1635 = vsub.f32 %v1525, %v338
        %v1636 = vsub.f32 %v1528, %v339
        %v1637 = vsub.f32 %v1531, %v340
        %v1638 = vsub.f32 %v1534, %v341
        %v1639 = vsub.f32 %v1537, %v342
        %v1640 = vsub.f32 %v1540, %v343
        %v1641 = vsub.f32 %v1543, %v344
        %v1642 = vmul.f32 %v1610, %v1610
        %v1643 = vmul.f32 %v1611, %v1611
        %v1644 = vmul.f32 %v1612, %v1612
        %v1645 = vmul.f32 %v1613, %v1613
        %v1646 = vmul.f32 %v1614, %v1614
        %v1647 = vmul.f32 %v1615, %v1615
        %v1648 = vmul.f32 %v1616, %v1616
        %v1649 = vmul.f32 %v1617, %v1617
        %v1650 = vmul.f32 %v1618, %v1618
        %v1651 = vmul.f32 %v1619, %v1619
        %v1652 = vmul.f32 %v1620, %v1620
        %v1653 = vmul.f32 %v1621, %v1621
        %v1654 = vmul.f32 %v1622, %v1622
        %v1655 = vmul.f32 %v1623, %v1623
        %v1656 = vmul.f32 %v1624, %v1624
        %v1657 = vmul.f32 %v1625, %v1625
        %v1658 = vmul.f32 %v1626, %v1626
        %v1659 = vmul.f32 %v1627, %v1627
        %v1660 = vmul.f32 %v1628, %v1628
        %v1661 = vmul.f32 %v1629, %v1629
        %v1662 = vmul.f32 %v1630, %v1630
        %v1663 = vmul.f32 %v1631, %v1631
        %v1664 = vmul.f32 %v1632, %v1632
        %v1665 = vmul.f32 %v1633, %v1633
        %v1666 = vmul.f32 %v1634, %v1634
        %v1667 = vmul.f32 %v1635, %v1635
        %v1668 = vmul.f32 %v1636, %v1636
        %v1669 = vmul.f32 %v1637, %v1637
        %v1670 = vmul.f32 %v1638, %v1638
        %v1671 = vmul.f32 %v1639, %v1639
        %v1672 = vmul.f32 %v1640, %v1640
        %v1673 = vmul.f32 %v1641, %v1641
        %v1674 = vsel %vm348, %v1642, 0.0
        %v1675 = vsel %vm348, %v1643, 0.0
        %v1676 = vadd.f32 %v1674, %v1675
        %v1677 = vsel %vm348, %v1644, 0.0
        %v1678 = vadd.f32 %v1676, %v1677
        %v1679 = vsel %vm348, %v1645, 0.0
        %v1680 = vadd.f32 %v1678, %v1679
        %v1681 = vsel %vm348, %v1646, 0.0
        %v1682 = vadd.f32 %v1680, %v1681
        %v1683 = vsel %vm348, %v1647, 0.0
        %v1684 = vadd.f32 %v1682, %v1683
        %v1685 = vsel %vm348, %v1648, 0.0
        %v1686 = vadd.f32 %v1684, %v1685
        %v1687 = vsel %vm348, %v1649, 0.0
        %v1688 = vadd.f32 %v1686, %v1687
        %v1689 = vsel %vm348, %v1650, 0.0
        %v1690 = vadd.f32 %v1688, %v1689
        %v1691 = vsel %vm348, %v1651, 0.0
        %v1692 = vadd.f32 %v1690, %v1691
        %v1693 = vsel %vm348, %v1652, 0.0
        %v1694 = vadd.f32 %v1692, %v1693
        %v1695 = vsel %vm348, %v1653, 0.0
        %v1696 = vadd.f32 %v1694, %v1695
        %v1697 = vsel %vm348, %v1654, 0.0
        %v1698 = vadd.f32 %v1696, %v1697
        %v1699 = vsel %vm348, %v1655, 0.0
        %v1700 = vadd.f32 %v1698, %v1699
        %v1701 = vsel %vm348, %v1656, 0.0
        %v1702 = vadd.f32 %v1700, %v1701
        %v1703 = vsel %vm348, %v1657, 0.0
        %v1704 = vadd.f32 %v1702, %v1703
        %v1705 = vsel %vm348, %v1658, 0.0
        %v1706 = vadd.f32 %v1704, %v1705
        %v1707 = vsel %vm348, %v1659, 0.0
        %v1708 = vadd.f32 %v1706, %v1707
        %v1709 = vsel %vm348, %v1660, 0.0
        %v1710 = vadd.f32 %v1708, %v1709
        %v1711 = vsel %vm348, %v1661, 0.0
        %v1712 = vadd.f32 %v1710, %v1711
        %v1713 = vsel %vm348, %v1662, 0.0
        %v1714 = vadd.f32 %v1712, %v1713
        %v1715 = vsel %vm348, %v1663, 0.0
        %v1716 = vadd.f32 %v1714, %v1715
        %v1717 = vsel %vm348, %v1664, 0.0
        %v1718 = vadd.f32 %v1716, %v1717
        %v1719 = vsel %vm348, %v1665, 0.0
        %v1720 = vadd.f32 %v1718, %v1719
        %v1721 = vsel %vm348, %v1666, 0.0
        %v1722 = vadd.f32 %v1720, %v1721
        %v1723 = vsel %vm348, %v1667, 0.0
        %v1724 = vadd.f32 %v1722, %v1723
        %v1725 = vsel %vm348, %v1668, 0.0
        %v1726 = vadd.f32 %v1724, %v1725
        %v1727 = vsel %vm348, %v1669, 0.0
        %v1728 = vadd.f32 %v1726, %v1727
        %v1729 = vsel %vm348, %v1670, 0.0
        %v1730 = vadd.f32 %v1728, %v1729
        %v1731 = vsel %vm348, %v1671, 0.0
        %v1732 = vadd.f32 %v1730, %v1731
        %v1733 = vsel %vm348, %v1672, 0.0
        %v1734 = vadd.f32 %v1732, %v1733
        %v1735 = vsel %vm348, %v1673, 0.0
        %v1736 = vadd.f32 %v1734, %v1735
        %1737 = vadd.xlane.f32.xlu0 %v1736
        %v1738 = vpop.xlane.xlu0 %1737
        %v1739 = vrot.slane %v1738, 4
        %v1740 = vadd.f32 %v1738, %v1739
        %v1741 = vrot.slane %v1740, 2
        %v1742 = vadd.f32 %v1740, %v1741
        %v1743 = vrot.slane %v1742, 1
        %v1744 = vadd.f32 %v1742, %v1743
        %s1745 = vtos %v1744
        %v1746 = vstv %s1745
        %vm1747 = vcmask 0
        %1748 = vst.msk [vmem:[%s312] sm:$0x1] %vm1747, %v1746
        %v1749 = vsel %vm599, %v1304, 0.0
        %v1750 = vsel %vm599, %v1305, 0.0
        %v1751 = vadd.f32 %v1749, %v1750
        %v1752 = vsel %vm599, %v1306, 0.0
        %v1753 = vadd.f32 %v1751, %v1752
        %v1754 = vsel %vm599, %v1307, 0.0
        %v1755 = vadd.f32 %v1753, %v1754
        %v1756 = vsel %vm599, %v1308, 0.0
        %v1757 = vadd.f32 %v1755, %v1756
        %v1758 = vsel %vm599, %v1309, 0.0
        %v1759 = vadd.f32 %v1757, %v1758
        %v1760 = vsel %vm599, %v1310, 0.0
        %v1761 = vadd.f32 %v1759, %v1760
        %v1762 = vsel %vm599, %v1311, 0.0
        %v1763 = vadd.f32 %v1761, %v1762
        %v1764 = vsel %vm599, %v1312, 0.0
        %v1765 = vadd.f32 %v1763, %v1764
        %v1766 = vsel %vm599, %v1313, 0.0
        %v1767 = vadd.f32 %v1765, %v1766
        %v1768 = vsel %vm599, %v1314, 0.0
        %v1769 = vadd.f32 %v1767, %v1768
        %v1770 = vsel %vm599, %v1315, 0.0
        %v1771 = vadd.f32 %v1769, %v1770
        %v1772 = vsel %vm599, %v1316, 0.0
        %v1773 = vadd.f32 %v1771, %v1772
        %v1774 = vsel %vm599, %v1317, 0.0
        %v1775 = vadd.f32 %v1773, %v1774
        %v1776 = vsel %vm599, %v1318, 0.0
        %v1777 = vadd.f32 %v1775, %v1776
        %v1778 = vsel %vm599, %v1319, 0.0
        %v1779 = vadd.f32 %v1777, %v1778
        %v1780 = vsel %vm599, %v1320, 0.0
        %v1781 = vadd.f32 %v1779, %v1780
        %v1782 = vsel %vm599, %v1321, 0.0
        %v1783 = vadd.f32 %v1781, %v1782
        %v1784 = vsel %vm599, %v1322, 0.0
        %v1785 = vadd.f32 %v1783, %v1784
        %v1786 = vsel %vm599, %v1323, 0.0
        %v1787 = vadd.f32 %v1785, %v1786
        %v1788 = vsel %vm599, %v1324, 0.0
        %v1789 = vadd.f32 %v1787, %v1788
        %v1790 = vsel %vm599, %v1325, 0.0
        %v1791 = vadd.f32 %v1789, %v1790
        %v1792 = vsel %vm599, %v1326, 0.0
        %v1793 = vadd.f32 %v1791, %v1792
        %v1794 = vsel %vm599, %v1327, 0.0
        %v1795 = vadd.f32 %v1793, %v1794
        %v1796 = vsel %vm599, %v1328, 0.0
        %v1797 = vadd.f32 %v1795, %v1796
        %v1798 = vsel %vm599, %v1329, 0.0
        %v1799 = vadd.f32 %v1797, %v1798
        %v1800 = vsel %vm599, %v1330, 0.0
        %v1801 = vadd.f32 %v1799, %v1800
        %v1802 = vsel %vm599, %v1331, 0.0
        %v1803 = vadd.f32 %v1801, %v1802
        %v1804 = vsel %vm599, %v1332, 0.0
        %v1805 = vadd.f32 %v1803, %v1804
        %v1806 = vsel %vm599, %v1333, 0.0
        %v1807 = vadd.f32 %v1805, %v1806
        %v1808 = vsel %vm599, %v1334, 0.0
        %v1809 = vadd.f32 %v1807, %v1808
        %v1810 = vsel %vm599, %v1335, 0.0
        %v1811 = vadd.f32 %v1809, %v1810
        %v1812 = vrot.slane %v1811, 4
        %v1813 = vadd.f32 %v1811, %v1812
        %v1814 = vrot.slane %v1813, 2
        %v1815 = vadd.f32 %v1813, %v1814
        %v1816 = vrot.slane %v1815, 1
        %v1817 = vadd.f32 %v1815, %v1816
        %vm1818 = vcmask 57344
        %1819 = vst.msk [vmem:[%s291] sm:$0x1] %vm1818, %v1817
        %s1820 = smul.u32 32, %s22
        %p1821 = scmp.lt.s32.totalorder %s1820, 63
        %s1822 = scalar_select %p1821, %s1820, 63
        %s1823 = smul.addr %s1822, 8
        %s1824 = scalar_lea.vmem %s4, %s1823
        %s1825 = smul.u32 32, %s22
        %p1826 = scmp.lt.s32.totalorder %s1825, 63
        %s1827 = scalar_select %p1826, %s1825, 63
        %s1828 = smul.addr %s1827, 8
        %s1829 = scalar_lea.vmem %s5, %s1828
        %p1830 = scmp.lt.s32.totalorder %s22, 1
        %s1831 = scalar_select %p1830, %s22, 1
        %s1832 = scalar_lea.vmem %s6, %s1831
        %s1833 = sand.u32 %s197, 1
        %s1834 = scalar_lea.sflag [#allocation3], %s1833
        %s1835 = sand.u32 %s197, 1
        %s1836 = scalar_lea.vmem [#allocation2], %s1835
        // Predicated region
        $region37: #{tpu_custom_call.1} parent=35 // pred_check
          %p1837 = pneg %p129
        $region38: #{tpu_custom_call.1} parent=35 // pred_check_branch
          %1839 = sbr.rel (%p1837) target = $region40
        $region39: #{tpu_custom_call.1} parent=35 // pred_region
          %s1840 = smul.u32 32, %s22
        $region40: #{tpu_custom_call.1} parent=35 // pred_fallthru
          _
        // Predicated region
        $region41: #{tpu_custom_call.1} parent=35 // pred_check
          %p1841 = pneg %p155
        $region42: #{tpu_custom_call.1} parent=35 // pred_check_branch
          %1843 = sbr.rel (%p1841) target = $region44
        $region43: #{tpu_custom_call.1} parent=35 // pred_region
          %s1844 = smul.u32 32, %s22
        $region44: #{tpu_custom_call.1} parent=35 // pred_fallthru
          _
        // Predicated region
        $region45: #{tpu_custom_call.1} parent=35 // pred_check
          %p1845 = pneg %p181
        $region46: #{tpu_custom_call.1} parent=35 // pred_check_branch
          %1847 = sbr.rel (%p1845) target = $region48
        $region47: #{tpu_custom_call.1} parent=35 // pred_region
          _
        $region48: #{tpu_custom_call.1} parent=35 // pred_fallthru
          _
        // Predicated region
        $region49: #{tpu_custom_call.1} parent=35 // pred_check
          %p1848 = pneg %p207
        $region50: #{tpu_custom_call.1} parent=35 // pred_check_branch
          %1850 = sbr.rel (%p1848) target = $region52
        $region51: #{tpu_custom_call.1} parent=35 // pred_region
          %1852 = vsyncadd %s1834, 0
          %s1853 = scalar_lea.hbm %s7, %s22
          %s1855 = sshll.u32 %s1836, 4
          %s1856 = int_to_ptr.vmem [resolvable:$true] %s1855
          %s1857 = sshll.u32 %s1853, 4
          %s1858 = int_to_ptr.hbm [resolvable:$true] %s1857
          %1860 = dma.vmem_to_hbm [thread:$0]  %s1856, 16, %s1858, %s1834
        $region52: #{tpu_custom_call.1} parent=35 // pred_fallthru
          _
      $region36: #{tpu_custom_call.1} parent=5 // pred_fallthru
        _
      %p1861 = scmp.le.s32.totalorder 2, %s17
      // Predicated region
      $region53: #{tpu_custom_call.1} parent=5 // pred_check
        %p1862 = pneg %p1861
      $region54: #{tpu_custom_call.1} parent=5 // pred_check_branch
        %1864 = sbr.rel (%p1862) target = $region56
      $region55: #{tpu_custom_call.1} parent=5 // pred_region
        %s1865 = ssub.s32 %s17, 2
        // Predicated region
        $region57: #{tpu_custom_call.1} parent=55 // pred_check
          %p1866 = pneg %p135
        $region58: #{tpu_custom_call.1} parent=55 // pred_check_branch
          %1868 = sbr.rel (%p1866) target = $region60
        $region59: #{tpu_custom_call.1} parent=55 // pred_region
          %s1869 = smul.u32 32, %s23
          %p1870 = scmp.lt.s32.totalorder %s1869, 63
          %s1871 = scalar_select %p1870, %s1869, 63
          %s1872 = smul.addr %s1871, 8
          %s1873 = scalar_lea.vmem %s4, %s1872
        $region60: #{tpu_custom_call.1} parent=55 // pred_fallthru
          _
        // Predicated region
        $region61: #{tpu_custom_call.1} parent=55 // pred_check
          %p1874 = pneg %p161
        $region62: #{tpu_custom_call.1} parent=55 // pred_check_branch
          %1876 = sbr.rel (%p1874) target = $region64
        $region63: #{tpu_custom_call.1} parent=55 // pred_region
          %s1877 = smul.u32 32, %s23
          %p1878 = scmp.lt.s32.totalorder %s1877, 63
          %s1879 = scalar_select %p1878, %s1877, 63
          %s1880 = smul.addr %s1879, 8
          %s1881 = scalar_lea.vmem %s5, %s1880
        $region64: #{tpu_custom_call.1} parent=55 // pred_fallthru
          _
        // Predicated region
        $region65: #{tpu_custom_call.1} parent=55 // pred_check
          %p1882 = pneg %p187
        $region66: #{tpu_custom_call.1} parent=55 // pred_check_branch
          %1884 = sbr.rel (%p1882) target = $region68
        $region67: #{tpu_custom_call.1} parent=55 // pred_region
          %p1885 = scmp.lt.s32.totalorder %s23, 1
          %s1886 = scalar_select %p1885, %s23, 1
          %s1887 = scalar_lea.vmem %s6, %s1886
        $region68: #{tpu_custom_call.1} parent=55 // pred_fallthru
          _
        // Predicated region
        $region69: #{tpu_custom_call.1} parent=55 // pred_check
          %p1888 = pneg %p213
        $region70: #{tpu_custom_call.1} parent=55 // pred_check_branch
          %1890 = sbr.rel (%p1888) target = $region72
        $region71: #{tpu_custom_call.1} parent=55 // pred_region
          %s1891 = sand.u32 %s198, 1
          %s1892 = scalar_lea.sflag [#allocation3], %s1891
          %s1893 = sand.u32 %s198, 1
          %s1894 = scalar_lea.vmem [#allocation2], %s1893
          %1896 = dma.done %s1892, 16
        $region72: #{tpu_custom_call.1} parent=55 // pred_fallthru
          _
      $region56: #{tpu_custom_call.1} parent=5 // pred_fallthru
        _
    $region6: #{tpu_custom_call.1} parent=1 // loop_footer
      %s21 = sadd.s32 1, %s17
    $region7: #{tpu_custom_call.1} parent=1 // loop_footer_branch
      %16 = sbr.rel target = $region3
    $region8: #{tpu_custom_call.1} parent=1 // loop_exit
      _
    %1897 = vsyncpa [#allocation3], 1
    %s1898 = scalar_lea.sflag [#allocation3], 1
    %1899 = vsyncpa %s1898, 1

</llo_original>
